<compile_context>
chip_gen: v6e
topology: v6e:2x2x1
jax: 0.10.0
libtpu: 0.0.40
codegen_flags: <defaults>
</compile_context>

<pallas_src>
import numpy as np
import jax
import jax.numpy as jnp
from jax.experimental import pallas as pl
from jax.experimental.pallas import tpu as pltpu  # noqa: F401  (TPU backend)

LRELU_SLOPE = 0.2
BN_EPS = 1e-5
KSIZE = 4          # all convs are 4x4
STRIDE = 2         # all but the final conv are stride 2, pad 1
PAD = 1


# ----------------------------- constant builders ------------------------------

def _height_select(OH, H):
    """L[i, oh, h] = 1 iff h == 2*oh + i - 1 (stride 2, pad 1), else 0."""
    L = np.zeros((KSIZE, OH, H), np.float32)
    for i in range(KSIZE):
        for oh in range(OH):
            h = STRIDE * oh + i - PAD
            if 0 <= h < H:
                L[i, oh, h] = 1.0
    return L


def _width_weight(w, OW, W):
    """Banded width-x-channel matrix per kernel row.

    R[i, w*Cin + c, ow*Cout + co] = w[co, c, i, j] with j = w - 2*ow + 1
    (zero where the 4x4/stride-2/pad-1 window does not cover column w).
    """
    Cout, Cin, KH, KW = w.shape
    S = np.zeros((KW, W, OW), np.float32)
    for j in range(KW):
        for ow in range(OW):
            ww = STRIDE * ow + j - PAD
            if 0 <= ww < W:
                S[j, ww, ow] = 1.0
    # R5[i, w, c, ow, co] = sum_j S[j, w, ow] * w[co, c, i, j]
    R5 = jnp.einsum('jwo,kcij->iwcok', jnp.asarray(S), w)
    return R5.reshape(KH, W * Cin, OW * Cout)


def _channel_pool(OW, C):
    """P[ow*C + c, c'] = (c == c'); sums [1, OW*C] lanes into [1, C] channels."""
    return np.tile(np.eye(C, dtype=np.float32), (OW, 1))


# ------------------------------- fused kernel ---------------------------------

def _make_kernel(B, n_pyr):
    def kernel(*refs):
        it = iter(refs)
        x_ref = next(it)                       # [B, H, W*Cin]  bf16
        L0_ref = next(it)                      # [4, OH, H]     bf16
        R0_ref = next(it)                      # [4, W*Cin, OW*Cout] bf16
        pyr_refs = []
        for _ in range(n_pyr):                 # (L, R, gamma, beta, P, P^T)
            pyr_refs.append(tuple(next(it) for _ in range(6)))
        wlast_ref = next(it)                   # [4, 4*Cf]      f32
        feats_ref = next(it)                   # [B, Hf, Wf*Cf] f32
        z_ref = next(it)                       # [B, 1]         f32
        cls_ref = next(it)                     # [B, 1]         f32
        mean_ref = next(it)                    # [1, 1]         f32

        def lrelu(v):
            return jnp.where(v > 0, v, LRELU_SLOPE * v)

        def conv_block(xb_bf16, L_ref, R_ref):
            # stride-2 4x4 conv as 4 height-tap matmul-accumulates (MXU, bf16 in,
            # f32 accumulation); everything stays in VMEM.
            y = None
            for i in range(KSIZE):
                t = jnp.dot(L_ref[i], xb_bf16,
                            preferred_element_type=jnp.float32).astype(jnp.bfloat16)
                p = jnp.dot(t, R_ref[i], preferred_element_type=jnp.float32)
                y = p if y is None else y + p
            return y                           # f32 [OH, OW*Cout]

        # ---- initial conv + LeakyReLU (per batch element, trace-time unroll) ----
        acts = []
        for b in range(B):
            acts.append(lrelu(conv_block(x_ref[b], L0_ref, R0_ref)))

        # ---- pyramid layers: conv + BatchNorm (batch stats) + LeakyReLU ----
        for (L_ref, R_ref, g_ref, b_ref, P_ref, Pt_ref) in pyr_refs:
            ys = [conv_block(a.astype(jnp.bfloat16), L_ref, R_ref) for a in acts]

            Pm = P_ref[...]                    # [OW*C, C] f32
            Cout = Pm.shape[1]
            OH, OWC = ys[0].shape
            inv_n = 1.0 / float(B * OH * (OWC // Cout))

            colsum = sum(jnp.sum(y, axis=0, keepdims=True) for y in ys)
            colsq = sum(jnp.sum(y * y, axis=0, keepdims=True) for y in ys)
            csum = jnp.dot(colsum, Pm, preferred_element_type=jnp.float32)  # [1, C]
            csq = jnp.dot(colsq, Pm, preferred_element_type=jnp.float32)    # [1, C]
            mean = csum * inv_n
            var = csq * inv_n - mean * mean    # one-pass E[y^2] - mean^2
            inv_std = jax.lax.rsqrt(var + BN_EPS)
            scale_c = g_ref[...] * inv_std
            shift_c = b_ref[...] - mean * scale_c
            Ptm = Pt_ref[...]                  # [C, OW*C] f32
            scale_l = jnp.dot(scale_c, Ptm, preferred_element_type=jnp.float32)
            shift_l = jnp.dot(shift_c, Ptm, preferred_element_type=jnp.float32)

            acts = [lrelu(y * scale_l + shift_l) for y in ys]

        # ---- final 4x4 conv (-> scalar) + sigmoid + mean over batch ----
        wrow = wlast_ref[...]                  # [4, 4*Cf] f32, layout [h, w*C + c]
        zsum = None
        for b in range(B):
            fb = acts[b]                       # f32 [4, 4*Cf]
            feats_ref[b] = fb                  # features (raw [h, w*C + c] layout)
            zb = jnp.sum(jnp.sum(fb * wrow, axis=1, keepdims=True),
                         axis=0, keepdims=True)            # [1, 1]
            z_ref[pl.ds(b, 1), :] = zb
            cls_ref[pl.ds(b, 1), :] = jax.nn.sigmoid(zb)
            zsum = zb if zsum is None else zsum + zb
        mean_ref[...] = zsum * (1.0 / B)

    return kernel


def _full_spec(shape):
    # whole array as a single block (no grid -> index_map takes no args)
    return pl.BlockSpec(shape, lambda: (0,) * len(shape))


# ------------------------------- model glue -----------------------------------

def build_params(key, nc, ndf, isize):
    """DisEncoder(config, isize, nz=1) weight shapes, deterministic init."""
    keys = jax.random.split(key, 16)
    ki = 0

    def nrm(shape, scale=0.02):
        nonlocal ki
        k = keys[ki]
        ki += 1
        return jax.random.normal(k, shape, jnp.float32) * scale

    convs = []
    convs.append({'w': nrm((ndf, nc, 4, 4)), 'bn': None})        # initial conv
    csize, cndf = isize // 2, ndf
    while csize > 4:                                             # pyramid
        w = nrm((cndf * 2, cndf, 4, 4))
        gamma = 1.0 + nrm((1, cndf * 2))
        beta = jnp.zeros((1, cndf * 2), jnp.float32)
        convs.append({'w': w, 'bn': (gamma, beta)})
        cndf *= 2
        csize //= 2
    w_last = nrm((1, cndf, 4, 4))                                # final conv
    return {'convs': convs, 'w_last': w_last}


def prepare(params, nc, isize):
    """Build all constant kernel operands (L/R/P/Pt/wrow) once, outside jit."""
    consts = []
    H = W = isize
    w0 = params['convs'][0]['w']
    OH, OW = H // 2, W // 2
    consts += [jnp.asarray(_height_select(OH, H), jnp.bfloat16),
               _width_weight(w0, OW, W).astype(jnp.bfloat16)]
    H, W, C = OH, OW, w0.shape[0]
    for layer in params['convs'][1:]:
        w = layer['w']
        gamma, beta = layer['bn']
        C_out = w.shape[0]
        OH, OW = H // 2, W // 2
        P = _channel_pool(OW, C_out)
        consts += [jnp.asarray(_height_select(OH, H), jnp.bfloat16),
                   _width_weight(w, OW, W).astype(jnp.bfloat16),
                   gamma.astype(jnp.float32),
                   beta.astype(jnp.float32),
                   jnp.asarray(P),
                   jnp.asarray(P.T)]
        H, W, C = OH, OW, C_out
    wl = params['w_last'][0]                                      # [C, 4, 4]
    wrow = jnp.transpose(wl, (1, 2, 0)).reshape(KSIZE, KSIZE * C)  # [h, w*C + c]
    consts.append(wrow.astype(jnp.float32))
    return {'consts': consts,
            'n_pyr': len(params['convs']) - 1,
            'feat_hw': (H, W),
            'feat_c': C}


def discriminator_forward(prepared, x):
    """Returns (classifier [B], features [B,C,4,4], last_layer1 [1], last_layer [B,1,1,1])."""
    B, nc, H, W = x.shape
    # one-time relayout: NCHW -> [B, H, W*C] (lane axis = width*channels), bf16 for MXU
    x_rows = jnp.transpose(x, (0, 2, 3, 1)).reshape(B, H, W * nc).astype(jnp.bfloat16)

    fh, fw = prepared['feat_hw']
    fc = prepared['feat_c']
    out_shape = (jax.ShapeDtypeStruct((B, fh, fw * fc), jnp.float32),  # features (raw layout)
                 jax.ShapeDtypeStruct((B, 1), jnp.float32),            # last_layer logits
                 jax.ShapeDtypeStruct((B, 1), jnp.float32),            # sigmoid(logits)
                 jax.ShapeDtypeStruct((1, 1), jnp.float32))            # mean over batch

    inputs = [x_rows] + list(prepared['consts'])
    feats_raw, z, sig, zmean = pl.pallas_call(
        _make_kernel(B, prepared['n_pyr']),
        out_shape=out_shape,
        in_specs=[_full_spec(a.shape) for a in inputs],
        out_specs=tuple(_full_spec(s.shape) for s in out_shape),
    )(*inputs)

    # single final conversion back to the PyTorch NCHW convention
    features = feats_raw.reshape(B, fh, fw, fc).transpose(0, 3, 1, 2)
    classifier = sig.reshape(B)
    last_layer = z.reshape(B, 1, 1, 1)
    last_layer1 = zmean.reshape(1)
    return classifier, features, last_layer1, last_layer


if __name__ == "__main__":
    key = jax.random.PRNGKey(0)
    kx, kp = jax.random.split(key)

    # small config: batch=2, number_channels=4, isize=16, ndf=8
    B, nc, isize, ndf = 2, 4, 16, 8
    x = jax.random.normal(kx, (B, nc, isize, isize), jnp.float32)
    params = build_params(kp, nc, ndf, isize)
    prepared = prepare(params, nc, isize)

    fwd = jax.jit(lambda xx: discriminator_forward(prepared, xx))
    classifier, features, last_layer1, last_layer = fwd(x)
    jax.block_until_ready((classifier, features, last_layer1, last_layer))

    assert classifier.shape == (B,)
    assert features.shape == (B, 2 * ndf, 4, 4)
    assert last_layer1.shape == (1,)
    assert last_layer.shape == (B, 1, 1, 1)
    print("KERNEL_OK")
</pallas_src>

<mosaic_0001>
module attributes {stable_mosaic.version = 11 : i64} {
  func.func @kernel(%arg0: memref<2x16x64xbf16, #tpu.memory_space<vmem>>, %arg1: memref<4x8x16xbf16, #tpu.memory_space<vmem>>, %arg2: memref<4x64x64xbf16, #tpu.memory_space<vmem>>, %arg3: memref<4x4x8xbf16, #tpu.memory_space<vmem>>, %arg4: memref<4x64x64xbf16, #tpu.memory_space<vmem>>, %arg5: memref<1x16xf32, #tpu.memory_space<vmem>>, %arg6: memref<1x16xf32, #tpu.memory_space<vmem>>, %arg7: memref<64x16xf32, #tpu.memory_space<vmem>>, %arg8: memref<16x64xf32, #tpu.memory_space<vmem>>, %arg9: memref<4x64xf32, #tpu.memory_space<vmem>>, %arg10: memref<2x4x64xf32, #tpu.memory_space<vmem>>, %arg11: memref<2x1xf32, #tpu.memory_space<vmem>>, %arg12: memref<2x1xf32, #tpu.memory_space<vmem>>, %arg13: memref<1x1xf32, #tpu.memory_space<vmem>>) attributes {dimension_semantics = [], scalar_prefetch = 0 : i64, scratch_operands = 0 : i64, tpu.core_type = #tpu.core_type<tc>} {
    %c0 = arith.constant 0 : index
    %c0_0 = arith.constant 0 : index
    %c0_1 = arith.constant 0 : index
    %0 = vector.load %arg0[%c0, %c0_0, %c0_1] : memref<2x16x64xbf16, #tpu.memory_space<vmem>>, vector<1x16x64xbf16>
    %1 = vector.shape_cast %0 : vector<1x16x64xbf16> to vector<16x64xbf16>
    %c0_2 = arith.constant 0 : index
    %c0_3 = arith.constant 0 : index
    %c0_4 = arith.constant 0 : index
    %2 = vector.load %arg1[%c0_2, %c0_3, %c0_4] : memref<4x8x16xbf16, #tpu.memory_space<vmem>>, vector<1x8x16xbf16>
    %3 = vector.shape_cast %2 : vector<1x8x16xbf16> to vector<8x16xbf16>
    %cst = arith.constant dense<0.000000e+00> : vector<8x64xf32>
    %4 = tpu.matmul %3, %1, %cst {dimension_numbers = #tpu.dot_dimension_numbers<[1], [0], [0], [1], [0, 0, 1, 1], [], []>} : vector<8x16xbf16>, vector<16x64xbf16>, vector<8x64xf32> -> vector<8x64xf32>
    %5 = arith.truncf %4 : vector<8x64xf32> to vector<8x64xbf16>
    %c0_5 = arith.constant 0 : index
    %c0_6 = arith.constant 0 : index
    %c0_7 = arith.constant 0 : index
    %6 = vector.load %arg2[%c0_5, %c0_6, %c0_7] : memref<4x64x64xbf16, #tpu.memory_space<vmem>>, vector<1x64x64xbf16>
    %7 = vector.shape_cast %6 : vector<1x64x64xbf16> to vector<64x64xbf16>
    %cst_8 = arith.constant dense<0.000000e+00> : vector<8x64xf32>
    %8 = tpu.matmul %5, %7, %cst_8 {dimension_numbers = #tpu.dot_dimension_numbers<[1], [0], [0], [1], [0, 0, 1, 1], [], []>} : vector<8x64xbf16>, vector<64x64xbf16>, vector<8x64xf32> -> vector<8x64xf32>
    %c1 = arith.constant 1 : index
    %c0_9 = arith.constant 0 : index
    %c0_10 = arith.constant 0 : index
    %9 = vector.load %arg1[%c1, %c0_9, %c0_10] : memref<4x8x16xbf16, #tpu.memory_space<vmem>>, vector<1x8x16xbf16>
    %10 = vector.shape_cast %9 : vector<1x8x16xbf16> to vector<8x16xbf16>
    %cst_11 = arith.constant dense<0.000000e+00> : vector<8x64xf32>
    %11 = tpu.matmul %10, %1, %cst_11 {dimension_numbers = #tpu.dot_dimension_numbers<[1], [0], [0], [1], [0, 0, 1, 1], [], []>} : vector<8x16xbf16>, vector<16x64xbf16>, vector<8x64xf32> -> vector<8x64xf32>
    %12 = arith.truncf %11 : vector<8x64xf32> to vector<8x64xbf16>
    %c1_12 = arith.constant 1 : index
    %c0_13 = arith.constant 0 : index
    %c0_14 = arith.constant 0 : index
    %13 = vector.load %arg2[%c1_12, %c0_13, %c0_14] : memref<4x64x64xbf16, #tpu.memory_space<vmem>>, vector<1x64x64xbf16>
    %14 = vector.shape_cast %13 : vector<1x64x64xbf16> to vector<64x64xbf16>
    %cst_15 = arith.constant dense<0.000000e+00> : vector<8x64xf32>
    %15 = tpu.matmul %12, %14, %cst_15 {dimension_numbers = #tpu.dot_dimension_numbers<[1], [0], [0], [1], [0, 0, 1, 1], [], []>} : vector<8x64xbf16>, vector<64x64xbf16>, vector<8x64xf32> -> vector<8x64xf32>
    %16 = arith.addf %8, %15 : vector<8x64xf32>
    %c2 = arith.constant 2 : index
    %c0_16 = arith.constant 0 : index
    %c0_17 = arith.constant 0 : index
    %17 = vector.load %arg1[%c2, %c0_16, %c0_17] : memref<4x8x16xbf16, #tpu.memory_space<vmem>>, vector<1x8x16xbf16>
    %18 = vector.shape_cast %17 : vector<1x8x16xbf16> to vector<8x16xbf16>
    %cst_18 = arith.constant dense<0.000000e+00> : vector<8x64xf32>
    %19 = tpu.matmul %18, %1, %cst_18 {dimension_numbers = #tpu.dot_dimension_numbers<[1], [0], [0], [1], [0, 0, 1, 1], [], []>} : vector<8x16xbf16>, vector<16x64xbf16>, vector<8x64xf32> -> vector<8x64xf32>
    %20 = arith.truncf %19 : vector<8x64xf32> to vector<8x64xbf16>
    %c2_19 = arith.constant 2 : index
    %c0_20 = arith.constant 0 : index
    %c0_21 = arith.constant 0 : index
    %21 = vector.load %arg2[%c2_19, %c0_20, %c0_21] : memref<4x64x64xbf16, #tpu.memory_space<vmem>>, vector<1x64x64xbf16>
    %22 = vector.shape_cast %21 : vector<1x64x64xbf16> to vector<64x64xbf16>
    %cst_22 = arith.constant dense<0.000000e+00> : vector<8x64xf32>
    %23 = tpu.matmul %20, %22, %cst_22 {dimension_numbers = #tpu.dot_dimension_numbers<[1], [0], [0], [1], [0, 0, 1, 1], [], []>} : vector<8x64xbf16>, vector<64x64xbf16>, vector<8x64xf32> -> vector<8x64xf32>
    %24 = arith.addf %16, %23 : vector<8x64xf32>
    %c3 = arith.constant 3 : index
    %c0_23 = arith.constant 0 : index
    %c0_24 = arith.constant 0 : index
    %25 = vector.load %arg1[%c3, %c0_23, %c0_24] : memref<4x8x16xbf16, #tpu.memory_space<vmem>>, vector<1x8x16xbf16>
    %26 = vector.shape_cast %25 : vector<1x8x16xbf16> to vector<8x16xbf16>
    %cst_25 = arith.constant dense<0.000000e+00> : vector<8x64xf32>
    %27 = tpu.matmul %26, %1, %cst_25 {dimension_numbers = #tpu.dot_dimension_numbers<[1], [0], [0], [1], [0, 0, 1, 1], [], []>} : vector<8x16xbf16>, vector<16x64xbf16>, vector<8x64xf32> -> vector<8x64xf32>
    %28 = arith.truncf %27 : vector<8x64xf32> to vector<8x64xbf16>
    %c3_26 = arith.constant 3 : index
    %c0_27 = arith.constant 0 : index
    %c0_28 = arith.constant 0 : index
    %29 = vector.load %arg2[%c3_26, %c0_27, %c0_28] : memref<4x64x64xbf16, #tpu.memory_space<vmem>>, vector<1x64x64xbf16>
    %30 = vector.shape_cast %29 : vector<1x64x64xbf16> to vector<64x64xbf16>
    %cst_29 = arith.constant dense<0.000000e+00> : vector<8x64xf32>
    %31 = tpu.matmul %28, %30, %cst_29 {dimension_numbers = #tpu.dot_dimension_numbers<[1], [0], [0], [1], [0, 0, 1, 1], [], []>} : vector<8x64xbf16>, vector<64x64xbf16>, vector<8x64xf32> -> vector<8x64xf32>
    %32 = arith.addf %24, %31 : vector<8x64xf32>
    %cst_30 = arith.constant 0.000000e+00 : f32
    %33 = vector.broadcast %cst_30 : f32 to vector<8x64xf32>
    %34 = arith.cmpf ogt, %32, %33 : vector<8x64xf32>
    %cst_31 = arith.constant 2.000000e-01 : f32
    %35 = vector.broadcast %cst_31 : f32 to vector<8x64xf32>
    %36 = arith.mulf %35, %32 : vector<8x64xf32>
    %37 = arith.select %34, %32, %36 : vector<8x64xi1>, vector<8x64xf32>
    %c1_32 = arith.constant 1 : index
    %c0_33 = arith.constant 0 : index
    %c0_34 = arith.constant 0 : index
    %38 = vector.load %arg0[%c1_32, %c0_33, %c0_34] : memref<2x16x64xbf16, #tpu.memory_space<vmem>>, vector<1x16x64xbf16>
    %39 = vector.shape_cast %38 : vector<1x16x64xbf16> to vector<16x64xbf16>
    %c0_35 = arith.constant 0 : index
    %c0_36 = arith.constant 0 : index
    %c0_37 = arith.constant 0 : index
    %40 = vector.load %arg1[%c0_35, %c0_36, %c0_37] : memref<4x8x16xbf16, #tpu.memory_space<vmem>>, vector<1x8x16xbf16>
    %41 = vector.shape_cast %40 : vector<1x8x16xbf16> to vector<8x16xbf16>
    %cst_38 = arith.constant dense<0.000000e+00> : vector<8x64xf32>
    %42 = tpu.matmul %41, %39, %cst_38 {dimension_numbers = #tpu.dot_dimension_numbers<[1], [0], [0], [1], [0, 0, 1, 1], [], []>} : vector<8x16xbf16>, vector<16x64xbf16>, vector<8x64xf32> -> vector<8x64xf32>
    %43 = arith.truncf %42 : vector<8x64xf32> to vector<8x64xbf16>
    %c0_39 = arith.constant 0 : index
    %c0_40 = arith.constant 0 : index
    %c0_41 = arith.constant 0 : index
    %44 = vector.load %arg2[%c0_39, %c0_40, %c0_41] : memref<4x64x64xbf16, #tpu.memory_space<vmem>>, vector<1x64x64xbf16>
    %45 = vector.shape_cast %44 : vector<1x64x64xbf16> to vector<64x64xbf16>
    %cst_42 = arith.constant dense<0.000000e+00> : vector<8x64xf32>
    %46 = tpu.matmul %43, %45, %cst_42 {dimension_numbers = #tpu.dot_dimension_numbers<[1], [0], [0], [1], [0, 0, 1, 1], [], []>} : vector<8x64xbf16>, vector<64x64xbf16>, vector<8x64xf32> -> vector<8x64xf32>
    %c1_43 = arith.constant 1 : index
    %c0_44 = arith.constant 0 : index
    %c0_45 = arith.constant 0 : index
    %47 = vector.load %arg1[%c1_43, %c0_44, %c0_45] : memref<4x8x16xbf16, #tpu.memory_space<vmem>>, vector<1x8x16xbf16>
    %48 = vector.shape_cast %47 : vector<1x8x16xbf16> to vector<8x16xbf16>
    %cst_46 = arith.constant dense<0.000000e+00> : vector<8x64xf32>
    %49 = tpu.matmul %48, %39, %cst_46 {dimension_numbers = #tpu.dot_dimension_numbers<[1], [0], [0], [1], [0, 0, 1, 1], [], []>} : vector<8x16xbf16>, vector<16x64xbf16>, vector<8x64xf32> -> vector<8x64xf32>
    %50 = arith.truncf %49 : vector<8x64xf32> to vector<8x64xbf16>
    %c1_47 = arith.constant 1 : index
    %c0_48 = arith.constant 0 : index
    %c0_49 = arith.constant 0 : index
    %51 = vector.load %arg2[%c1_47, %c0_48, %c0_49] : memref<4x64x64xbf16, #tpu.memory_space<vmem>>, vector<1x64x64xbf16>
    %52 = vector.shape_cast %51 : vector<1x64x64xbf16> to vector<64x64xbf16>
    %cst_50 = arith.constant dense<0.000000e+00> : vector<8x64xf32>
    %53 = tpu.matmul %50, %52, %cst_50 {dimension_numbers = #tpu.dot_dimension_numbers<[1], [0], [0], [1], [0, 0, 1, 1], [], []>} : vector<8x64xbf16>, vector<64x64xbf16>, vector<8x64xf32> -> vector<8x64xf32>
    %54 = arith.addf %46, %53 : vector<8x64xf32>
    %c2_51 = arith.constant 2 : index
    %c0_52 = arith.constant 0 : index
    %c0_53 = arith.constant 0 : index
    %55 = vector.load %arg1[%c2_51, %c0_52, %c0_53] : memref<4x8x16xbf16, #tpu.memory_space<vmem>>, vector<1x8x16xbf16>
    %56 = vector.shape_cast %55 : vector<1x8x16xbf16> to vector<8x16xbf16>
    %cst_54 = arith.constant dense<0.000000e+00> : vector<8x64xf32>
    %57 = tpu.matmul %56, %39, %cst_54 {dimension_numbers = #tpu.dot_dimension_numbers<[1], [0], [0], [1], [0, 0, 1, 1], [], []>} : vector<8x16xbf16>, vector<16x64xbf16>, vector<8x64xf32> -> vector<8x64xf32>
    %58 = arith.truncf %57 : vector<8x64xf32> to vector<8x64xbf16>
    %c2_55 = arith.constant 2 : index
    %c0_56 = arith.constant 0 : index
    %c0_57 = arith.constant 0 : index
    %59 = vector.load %arg2[%c2_55, %c0_56, %c0_57] : memref<4x64x64xbf16, #tpu.memory_space<vmem>>, vector<1x64x64xbf16>
    %60 = vector.shape_cast %59 : vector<1x64x64xbf16> to vector<64x64xbf16>
    %cst_58 = arith.constant dense<0.000000e+00> : vector<8x64xf32>
    %61 = tpu.matmul %58, %60, %cst_58 {dimension_numbers = #tpu.dot_dimension_numbers<[1], [0], [0], [1], [0, 0, 1, 1], [], []>} : vector<8x64xbf16>, vector<64x64xbf16>, vector<8x64xf32> -> vector<8x64xf32>
    %62 = arith.addf %54, %61 : vector<8x64xf32>
    %c3_59 = arith.constant 3 : index
    %c0_60 = arith.constant 0 : index
    %c0_61 = arith.constant 0 : index
    %63 = vector.load %arg1[%c3_59, %c0_60, %c0_61] : memref<4x8x16xbf16, #tpu.memory_space<vmem>>, vector<1x8x16xbf16>
    %64 = vector.shape_cast %63 : vector<1x8x16xbf16> to vector<8x16xbf16>
    %cst_62 = arith.constant dense<0.000000e+00> : vector<8x64xf32>
    %65 = tpu.matmul %64, %39, %cst_62 {dimension_numbers = #tpu.dot_dimension_numbers<[1], [0], [0], [1], [0, 0, 1, 1], [], []>} : vector<8x16xbf16>, vector<16x64xbf16>, vector<8x64xf32> -> vector<8x64xf32>
    %66 = arith.truncf %65 : vector<8x64xf32> to vector<8x64xbf16>
    %c3_63 = arith.constant 3 : index
    %c0_64 = arith.constant 0 : index
    %c0_65 = arith.constant 0 : index
    %67 = vector.load %arg2[%c3_63, %c0_64, %c0_65] : memref<4x64x64xbf16, #tpu.memory_space<vmem>>, vector<1x64x64xbf16>
    %68 = vector.shape_cast %67 : vector<1x64x64xbf16> to vector<64x64xbf16>
    %cst_66 = arith.constant dense<0.000000e+00> : vector<8x64xf32>
    %69 = tpu.matmul %66, %68, %cst_66 {dimension_numbers = #tpu.dot_dimension_numbers<[1], [0], [0], [1], [0, 0, 1, 1], [], []>} : vector<8x64xbf16>, vector<64x64xbf16>, vector<8x64xf32> -> vector<8x64xf32>
    %70 = arith.addf %62, %69 : vector<8x64xf32>
    %cst_67 = arith.constant 0.000000e+00 : f32
    %71 = vector.broadcast %cst_67 : f32 to vector<8x64xf32>
    %72 = arith.cmpf ogt, %70, %71 : vector<8x64xf32>
    %cst_68 = arith.constant 2.000000e-01 : f32
    %73 = vector.broadcast %cst_68 : f32 to vector<8x64xf32>
    %74 = arith.mulf %73, %70 : vector<8x64xf32>
    %75 = arith.select %72, %70, %74 : vector<8x64xi1>, vector<8x64xf32>
    %76 = arith.truncf %37 : vector<8x64xf32> to vector<8x64xbf16>
    %c0_69 = arith.constant 0 : index
    %c0_70 = arith.constant 0 : index
    %c0_71 = arith.constant 0 : index
    %77 = vector.load %arg3[%c0_69, %c0_70, %c0_71] : memref<4x4x8xbf16, #tpu.memory_space<vmem>>, vector<1x4x8xbf16>
    %78 = vector.shape_cast %77 : vector<1x4x8xbf16> to vector<4x8xbf16>
    %cst_72 = arith.constant dense<0.000000e+00> : vector<4x64xf32>
    %79 = tpu.matmul %78, %76, %cst_72 {dimension_numbers = #tpu.dot_dimension_numbers<[1], [0], [0], [1], [0, 0, 1, 1], [], []>} : vector<4x8xbf16>, vector<8x64xbf16>, vector<4x64xf32> -> vector<4x64xf32>
    %80 = arith.truncf %79 : vector<4x64xf32> to vector<4x64xbf16>
    %c0_73 = arith.constant 0 : index
    %c0_74 = arith.constant 0 : index
    %c0_75 = arith.constant 0 : index
    %81 = vector.load %arg4[%c0_73, %c0_74, %c0_75] : memref<4x64x64xbf16, #tpu.memory_space<vmem>>, vector<1x64x64xbf16>
    %82 = vector.shape_cast %81 : vector<1x64x64xbf16> to vector<64x64xbf16>
    %cst_76 = arith.constant dense<0.000000e+00> : vector<4x64xf32>
    %83 = tpu.matmul %80, %82, %cst_76 {dimension_numbers = #tpu.dot_dimension_numbers<[1], [0], [0], [1], [0, 0, 1, 1], [], []>} : vector<4x64xbf16>, vector<64x64xbf16>, vector<4x64xf32> -> vector<4x64xf32>
    %c1_77 = arith.constant 1 : index
    %c0_78 = arith.constant 0 : index
    %c0_79 = arith.constant 0 : index
    %84 = vector.load %arg3[%c1_77, %c0_78, %c0_79] : memref<4x4x8xbf16, #tpu.memory_space<vmem>>, vector<1x4x8xbf16>
    %85 = vector.shape_cast %84 : vector<1x4x8xbf16> to vector<4x8xbf16>
    %cst_80 = arith.constant dense<0.000000e+00> : vector<4x64xf32>
    %86 = tpu.matmul %85, %76, %cst_80 {dimension_numbers = #tpu.dot_dimension_numbers<[1], [0], [0], [1], [0, 0, 1, 1], [], []>} : vector<4x8xbf16>, vector<8x64xbf16>, vector<4x64xf32> -> vector<4x64xf32>
    %87 = arith.truncf %86 : vector<4x64xf32> to vector<4x64xbf16>
    %c1_81 = arith.constant 1 : index
    %c0_82 = arith.constant 0 : index
    %c0_83 = arith.constant 0 : index
    %88 = vector.load %arg4[%c1_81, %c0_82, %c0_83] : memref<4x64x64xbf16, #tpu.memory_space<vmem>>, vector<1x64x64xbf16>
    %89 = vector.shape_cast %88 : vector<1x64x64xbf16> to vector<64x64xbf16>
    %cst_84 = arith.constant dense<0.000000e+00> : vector<4x64xf32>
    %90 = tpu.matmul %87, %89, %cst_84 {dimension_numbers = #tpu.dot_dimension_numbers<[1], [0], [0], [1], [0, 0, 1, 1], [], []>} : vector<4x64xbf16>, vector<64x64xbf16>, vector<4x64xf32> -> vector<4x64xf32>
    %91 = arith.addf %83, %90 : vector<4x64xf32>
    %c2_85 = arith.constant 2 : index
    %c0_86 = arith.constant 0 : index
    %c0_87 = arith.constant 0 : index
    %92 = vector.load %arg3[%c2_85, %c0_86, %c0_87] : memref<4x4x8xbf16, #tpu.memory_space<vmem>>, vector<1x4x8xbf16>
    %93 = vector.shape_cast %92 : vector<1x4x8xbf16> to vector<4x8xbf16>
    %cst_88 = arith.constant dense<0.000000e+00> : vector<4x64xf32>
    %94 = tpu.matmul %93, %76, %cst_88 {dimension_numbers = #tpu.dot_dimension_numbers<[1], [0], [0], [1], [0, 0, 1, 1], [], []>} : vector<4x8xbf16>, vector<8x64xbf16>, vector<4x64xf32> -> vector<4x64xf32>
    %95 = arith.truncf %94 : vector<4x64xf32> to vector<4x64xbf16>
    %c2_89 = arith.constant 2 : index
    %c0_90 = arith.constant 0 : index
    %c0_91 = arith.constant 0 : index
    %96 = vector.load %arg4[%c2_89, %c0_90, %c0_91] : memref<4x64x64xbf16, #tpu.memory_space<vmem>>, vector<1x64x64xbf16>
    %97 = vector.shape_cast %96 : vector<1x64x64xbf16> to vector<64x64xbf16>
    %cst_92 = arith.constant dense<0.000000e+00> : vector<4x64xf32>
    %98 = tpu.matmul %95, %97, %cst_92 {dimension_numbers = #tpu.dot_dimension_numbers<[1], [0], [0], [1], [0, 0, 1, 1], [], []>} : vector<4x64xbf16>, vector<64x64xbf16>, vector<4x64xf32> -> vector<4x64xf32>
    %99 = arith.addf %91, %98 : vector<4x64xf32>
    %c3_93 = arith.constant 3 : index
    %c0_94 = arith.constant 0 : index
    %c0_95 = arith.constant 0 : index
    %100 = vector.load %arg3[%c3_93, %c0_94, %c0_95] : memref<4x4x8xbf16, #tpu.memory_space<vmem>>, vector<1x4x8xbf16>
    %101 = vector.shape_cast %100 : vector<1x4x8xbf16> to vector<4x8xbf16>
    %cst_96 = arith.constant dense<0.000000e+00> : vector<4x64xf32>
    %102 = tpu.matmul %101, %76, %cst_96 {dimension_numbers = #tpu.dot_dimension_numbers<[1], [0], [0], [1], [0, 0, 1, 1], [], []>} : vector<4x8xbf16>, vector<8x64xbf16>, vector<4x64xf32> -> vector<4x64xf32>
    %103 = arith.truncf %102 : vector<4x64xf32> to vector<4x64xbf16>
    %c3_97 = arith.constant 3 : index
    %c0_98 = arith.constant 0 : index
    %c0_99 = arith.constant 0 : index
    %104 = vector.load %arg4[%c3_97, %c0_98, %c0_99] : memref<4x64x64xbf16, #tpu.memory_space<vmem>>, vector<1x64x64xbf16>
    %105 = vector.shape_cast %104 : vector<1x64x64xbf16> to vector<64x64xbf16>
    %cst_100 = arith.constant dense<0.000000e+00> : vector<4x64xf32>
    %106 = tpu.matmul %103, %105, %cst_100 {dimension_numbers = #tpu.dot_dimension_numbers<[1], [0], [0], [1], [0, 0, 1, 1], [], []>} : vector<4x64xbf16>, vector<64x64xbf16>, vector<4x64xf32> -> vector<4x64xf32>
    %107 = arith.addf %99, %106 : vector<4x64xf32>
    %108 = arith.truncf %75 : vector<8x64xf32> to vector<8x64xbf16>
    %c0_101 = arith.constant 0 : index
    %c0_102 = arith.constant 0 : index
    %c0_103 = arith.constant 0 : index
    %109 = vector.load %arg3[%c0_101, %c0_102, %c0_103] : memref<4x4x8xbf16, #tpu.memory_space<vmem>>, vector<1x4x8xbf16>
    %110 = vector.shape_cast %109 : vector<1x4x8xbf16> to vector<4x8xbf16>
    %cst_104 = arith.constant dense<0.000000e+00> : vector<4x64xf32>
    %111 = tpu.matmul %110, %108, %cst_104 {dimension_numbers = #tpu.dot_dimension_numbers<[1], [0], [0], [1], [0, 0, 1, 1], [], []>} : vector<4x8xbf16>, vector<8x64xbf16>, vector<4x64xf32> -> vector<4x64xf32>
    %112 = arith.truncf %111 : vector<4x64xf32> to vector<4x64xbf16>
    %c0_105 = arith.constant 0 : index
    %c0_106 = arith.constant 0 : index
    %c0_107 = arith.constant 0 : index
    %113 = vector.load %arg4[%c0_105, %c0_106, %c0_107] : memref<4x64x64xbf16, #tpu.memory_space<vmem>>, vector<1x64x64xbf16>
    %114 = vector.shape_cast %113 : vector<1x64x64xbf16> to vector<64x64xbf16>
    %cst_108 = arith.constant dense<0.000000e+00> : vector<4x64xf32>
    %115 = tpu.matmul %112, %114, %cst_108 {dimension_numbers = #tpu.dot_dimension_numbers<[1], [0], [0], [1], [0, 0, 1, 1], [], []>} : vector<4x64xbf16>, vector<64x64xbf16>, vector<4x64xf32> -> vector<4x64xf32>
    %c1_109 = arith.constant 1 : index
    %c0_110 = arith.constant 0 : index
    %c0_111 = arith.constant 0 : index
    %116 = vector.load %arg3[%c1_109, %c0_110, %c0_111] : memref<4x4x8xbf16, #tpu.memory_space<vmem>>, vector<1x4x8xbf16>
    %117 = vector.shape_cast %116 : vector<1x4x8xbf16> to vector<4x8xbf16>
    %cst_112 = arith.constant dense<0.000000e+00> : vector<4x64xf32>
    %118 = tpu.matmul %117, %108, %cst_112 {dimension_numbers = #tpu.dot_dimension_numbers<[1], [0], [0], [1], [0, 0, 1, 1], [], []>} : vector<4x8xbf16>, vector<8x64xbf16>, vector<4x64xf32> -> vector<4x64xf32>
    %119 = arith.truncf %118 : vector<4x64xf32> to vector<4x64xbf16>
    %c1_113 = arith.constant 1 : index
    %c0_114 = arith.constant 0 : index
    %c0_115 = arith.constant 0 : index
    %120 = vector.load %arg4[%c1_113, %c0_114, %c0_115] : memref<4x64x64xbf16, #tpu.memory_space<vmem>>, vector<1x64x64xbf16>
    %121 = vector.shape_cast %120 : vector<1x64x64xbf16> to vector<64x64xbf16>
    %cst_116 = arith.constant dense<0.000000e+00> : vector<4x64xf32>
    %122 = tpu.matmul %119, %121, %cst_116 {dimension_numbers = #tpu.dot_dimension_numbers<[1], [0], [0], [1], [0, 0, 1, 1], [], []>} : vector<4x64xbf16>, vector<64x64xbf16>, vector<4x64xf32> -> vector<4x64xf32>
    %123 = arith.addf %115, %122 : vector<4x64xf32>
    %c2_117 = arith.constant 2 : index
    %c0_118 = arith.constant 0 : index
    %c0_119 = arith.constant 0 : index
    %124 = vector.load %arg3[%c2_117, %c0_118, %c0_119] : memref<4x4x8xbf16, #tpu.memory_space<vmem>>, vector<1x4x8xbf16>
    %125 = vector.shape_cast %124 : vector<1x4x8xbf16> to vector<4x8xbf16>
    %cst_120 = arith.constant dense<0.000000e+00> : vector<4x64xf32>
    %126 = tpu.matmul %125, %108, %cst_120 {dimension_numbers = #tpu.dot_dimension_numbers<[1], [0], [0], [1], [0, 0, 1, 1], [], []>} : vector<4x8xbf16>, vector<8x64xbf16>, vector<4x64xf32> -> vector<4x64xf32>
    %127 = arith.truncf %126 : vector<4x64xf32> to vector<4x64xbf16>
    %c2_121 = arith.constant 2 : index
    %c0_122 = arith.constant 0 : index
    %c0_123 = arith.constant 0 : index
    %128 = vector.load %arg4[%c2_121, %c0_122, %c0_123] : memref<4x64x64xbf16, #tpu.memory_space<vmem>>, vector<1x64x64xbf16>
    %129 = vector.shape_cast %128 : vector<1x64x64xbf16> to vector<64x64xbf16>
    %cst_124 = arith.constant dense<0.000000e+00> : vector<4x64xf32>
    %130 = tpu.matmul %127, %129, %cst_124 {dimension_numbers = #tpu.dot_dimension_numbers<[1], [0], [0], [1], [0, 0, 1, 1], [], []>} : vector<4x64xbf16>, vector<64x64xbf16>, vector<4x64xf32> -> vector<4x64xf32>
    %131 = arith.addf %123, %130 : vector<4x64xf32>
    %c3_125 = arith.constant 3 : index
    %c0_126 = arith.constant 0 : index
    %c0_127 = arith.constant 0 : index
    %132 = vector.load %arg3[%c3_125, %c0_126, %c0_127] : memref<4x4x8xbf16, #tpu.memory_space<vmem>>, vector<1x4x8xbf16>
    %133 = vector.shape_cast %132 : vector<1x4x8xbf16> to vector<4x8xbf16>
    %cst_128 = arith.constant dense<0.000000e+00> : vector<4x64xf32>
    %134 = tpu.matmul %133, %108, %cst_128 {dimension_numbers = #tpu.dot_dimension_numbers<[1], [0], [0], [1], [0, 0, 1, 1], [], []>} : vector<4x8xbf16>, vector<8x64xbf16>, vector<4x64xf32> -> vector<4x64xf32>
    %135 = arith.truncf %134 : vector<4x64xf32> to vector<4x64xbf16>
    %c3_129 = arith.constant 3 : index
    %c0_130 = arith.constant 0 : index
    %c0_131 = arith.constant 0 : index
    %136 = vector.load %arg4[%c3_129, %c0_130, %c0_131] : memref<4x64x64xbf16, #tpu.memory_space<vmem>>, vector<1x64x64xbf16>
    %137 = vector.shape_cast %136 : vector<1x64x64xbf16> to vector<64x64xbf16>
    %cst_132 = arith.constant dense<0.000000e+00> : vector<4x64xf32>
    %138 = tpu.matmul %135, %137, %cst_132 {dimension_numbers = #tpu.dot_dimension_numbers<[1], [0], [0], [1], [0, 0, 1, 1], [], []>} : vector<4x64xbf16>, vector<64x64xbf16>, vector<4x64xf32> -> vector<4x64xf32>
    %139 = arith.addf %131, %138 : vector<4x64xf32>
    %c0_133 = arith.constant 0 : index
    %c0_134 = arith.constant 0 : index
    %140 = vector.load %arg7[%c0_133, %c0_134] : memref<64x16xf32, #tpu.memory_space<vmem>>, vector<64x16xf32>
    %cst_135 = arith.constant dense<0.000000e+00> : vector<64xf32>
    %141 = vector.multi_reduction <add>, %107, %cst_135 [0] : vector<4x64xf32> to vector<64xf32>
    %142 = vector.shape_cast %141 : vector<64xf32> to vector<1x64xf32>
    %cst_136 = arith.constant 0.000000e+00 : f32
    %143 = vector.broadcast %cst_136 : f32 to vector<1x64xf32>
    %144 = arith.addf %143, %142 : vector<1x64xf32>
    %cst_137 = arith.constant dense<0.000000e+00> : vector<64xf32>
    %145 = vector.multi_reduction <add>, %139, %cst_137 [0] : vector<4x64xf32> to vector<64xf32>
    %146 = vector.shape_cast %145 : vector<64xf32> to vector<1x64xf32>
    %147 = arith.addf %144, %146 : vector<1x64xf32>
    %148 = arith.mulf %107, %107 : vector<4x64xf32>
    %cst_138 = arith.constant dense<0.000000e+00> : vector<64xf32>
    %149 = vector.multi_reduction <add>, %148, %cst_138 [0] : vector<4x64xf32> to vector<64xf32>
    %150 = vector.shape_cast %149 : vector<64xf32> to vector<1x64xf32>
    %cst_139 = arith.constant 0.000000e+00 : f32
    %151 = vector.broadcast %cst_139 : f32 to vector<1x64xf32>
    %152 = arith.addf %151, %150 : vector<1x64xf32>
    %153 = arith.mulf %139, %139 : vector<4x64xf32>
    %cst_140 = arith.constant dense<0.000000e+00> : vector<64xf32>
    %154 = vector.multi_reduction <add>, %153, %cst_140 [0] : vector<4x64xf32> to vector<64xf32>
    %155 = vector.shape_cast %154 : vector<64xf32> to vector<1x64xf32>
    %156 = arith.addf %152, %155 : vector<1x64xf32>
    %cst_141 = arith.constant dense<0.000000e+00> : vector<1x16xf32>
    %157 = tpu.matmul %147, %140, %cst_141 {dimension_numbers = #tpu.dot_dimension_numbers<[1], [0], [0], [1], [0, 0, 1, 1], [], []>} : vector<1x64xf32>, vector<64x16xf32>, vector<1x16xf32> -> vector<1x16xf32>
    %cst_142 = arith.constant dense<0.000000e+00> : vector<1x16xf32>
    %158 = tpu.matmul %156, %140, %cst_142 {dimension_numbers = #tpu.dot_dimension_numbers<[1], [0], [0], [1], [0, 0, 1, 1], [], []>} : vector<1x64xf32>, vector<64x16xf32>, vector<1x16xf32> -> vector<1x16xf32>
    %cst_143 = arith.constant 3.125000e-02 : f32
    %159 = vector.broadcast %cst_143 : f32 to vector<1x16xf32>
    %160 = arith.mulf %157, %159 : vector<1x16xf32>
    %cst_144 = arith.constant 3.125000e-02 : f32
    %161 = vector.broadcast %cst_144 : f32 to vector<1x16xf32>
    %162 = arith.mulf %158, %161 : vector<1x16xf32>
    %163 = arith.mulf %160, %160 : vector<1x16xf32>
    %164 = arith.subf %162, %163 : vector<1x16xf32>
    %cst_145 = arith.constant 9.99999974E-6 : f32
    %165 = vector.broadcast %cst_145 : f32 to vector<1x16xf32>
    %166 = arith.addf %164, %165 : vector<1x16xf32>
    %167 = math.rsqrt %166 : vector<1x16xf32>
    %c0_146 = arith.constant 0 : index
    %c0_147 = arith.constant 0 : index
    %168 = vector.load %arg5[%c0_146, %c0_147] : memref<1x16xf32, #tpu.memory_space<vmem>>, vector<1x16xf32>
    %169 = arith.mulf %168, %167 : vector<1x16xf32>
    %c0_148 = arith.constant 0 : index
    %c0_149 = arith.constant 0 : index
    %170 = vector.load %arg6[%c0_148, %c0_149] : memref<1x16xf32, #tpu.memory_space<vmem>>, vector<1x16xf32>
    %171 = arith.mulf %160, %169 : vector<1x16xf32>
    %172 = arith.subf %170, %171 : vector<1x16xf32>
    %c0_150 = arith.constant 0 : index
    %c0_151 = arith.constant 0 : index
    %173 = vector.load %arg8[%c0_150, %c0_151] : memref<16x64xf32, #tpu.memory_space<vmem>>, vector<16x64xf32>
    %cst_152 = arith.constant dense<0.000000e+00> : vector<1x64xf32>
    %174 = tpu.matmul %169, %173, %cst_152 {dimension_numbers = #tpu.dot_dimension_numbers<[1], [0], [0], [1], [0, 0, 1, 1], [], []>} : vector<1x16xf32>, vector<16x64xf32>, vector<1x64xf32> -> vector<1x64xf32>
    %cst_153 = arith.constant dense<0.000000e+00> : vector<1x64xf32>
    %175 = tpu.matmul %172, %173, %cst_153 {dimension_numbers = #tpu.dot_dimension_numbers<[1], [0], [0], [1], [0, 0, 1, 1], [], []>} : vector<1x16xf32>, vector<16x64xf32>, vector<1x64xf32> -> vector<1x64xf32>
    %176 = vector.broadcast %174 : vector<1x64xf32> to vector<4x64xf32>
    %177 = arith.mulf %107, %176 : vector<4x64xf32>
    %178 = vector.broadcast %175 : vector<1x64xf32> to vector<4x64xf32>
    %179 = arith.addf %177, %178 : vector<4x64xf32>
    %cst_154 = arith.constant 0.000000e+00 : f32
    %180 = vector.broadcast %cst_154 : f32 to vector<4x64xf32>
    %181 = arith.cmpf ogt, %179, %180 : vector<4x64xf32>
    %cst_155 = arith.constant 2.000000e-01 : f32
    %182 = vector.broadcast %cst_155 : f32 to vector<4x64xf32>
    %183 = arith.mulf %182, %179 : vector<4x64xf32>
    %184 = arith.select %181, %179, %183 : vector<4x64xi1>, vector<4x64xf32>
    %185 = vector.broadcast %174 : vector<1x64xf32> to vector<4x64xf32>
    %186 = arith.mulf %139, %185 : vector<4x64xf32>
    %187 = vector.broadcast %175 : vector<1x64xf32> to vector<4x64xf32>
    %188 = arith.addf %186, %187 : vector<4x64xf32>
    %cst_156 = arith.constant 0.000000e+00 : f32
    %189 = vector.broadcast %cst_156 : f32 to vector<4x64xf32>
    %190 = arith.cmpf ogt, %188, %189 : vector<4x64xf32>
    %cst_157 = arith.constant 2.000000e-01 : f32
    %191 = vector.broadcast %cst_157 : f32 to vector<4x64xf32>
    %192 = arith.mulf %191, %188 : vector<4x64xf32>
    %193 = arith.select %190, %188, %192 : vector<4x64xi1>, vector<4x64xf32>
    %c0_158 = arith.constant 0 : index
    %c0_159 = arith.constant 0 : index
    %194 = vector.load %arg9[%c0_158, %c0_159] : memref<4x64xf32, #tpu.memory_space<vmem>>, vector<4x64xf32>
    %c0_160 = arith.constant 0 : index
    %c0_161 = arith.constant 0 : index
    %c0_162 = arith.constant 0 : index
    %195 = vector.load %arg10[%c0_160, %c0_161, %c0_162] : memref<2x4x64xf32, #tpu.memory_space<vmem>>, vector<1x4x64xf32>
    %196 = vector.shape_cast %195 : vector<1x4x64xf32> to vector<4x64xf32>
    %197 = vector.shape_cast %184 : vector<4x64xf32> to vector<1x4x64xf32>
    tpu.vector_store %arg10[%c0_160, %c0_161, %c0_162], %197 {strides = array<i32>} : memref<2x4x64xf32, #tpu.memory_space<vmem>>, vector<1x4x64xf32>,
    %198 = arith.mulf %184, %194 : vector<4x64xf32>
    %cst_163 = arith.constant dense<0.000000e+00> : vector<4xf32>
    %199 = vector.multi_reduction <add>, %198, %cst_163 [1] : vector<4x64xf32> to vector<4xf32>
    %200 = vector.shape_cast %199 : vector<4xf32> to vector<4x1xf32>
    %cst_164 = arith.constant dense<0.000000e+00> : vector<1xf32>
    %201 = vector.multi_reduction <add>, %200, %cst_164 [0] : vector<4x1xf32> to vector<1xf32>
    %202 = vector.shape_cast %201 : vector<1xf32> to vector<1x1xf32>
    %c0_165 = arith.constant 0 : index
    %c0_166 = arith.constant 0 : index
    %203 = vector.load %arg11[%c0_165, %c0_166] : memref<2x1xf32, #tpu.memory_space<vmem>>, vector<1x1xf32>
    tpu.vector_store %arg11[%c0_165, %c0_166], %202 {strides = array<i32>} : memref<2x1xf32, #tpu.memory_space<vmem>>, vector<1x1xf32>,
    %204 = arith.negf %202 : vector<1x1xf32>
    %205 = math.exp %204 : vector<1x1xf32>
    %cst_167 = arith.constant 1.000000e+00 : f32
    %206 = vector.broadcast %cst_167 : f32 to vector<1x1xf32>
    %207 = arith.addf %206, %205 : vector<1x1xf32>
    %208 = arith.divf %206, %207 : vector<1x1xf32>
    %c0_168 = arith.constant 0 : index
    %c0_169 = arith.constant 0 : index
    %209 = vector.load %arg12[%c0_168, %c0_169] : memref<2x1xf32, #tpu.memory_space<vmem>>, vector<1x1xf32>
    tpu.vector_store %arg12[%c0_168, %c0_169], %208 {strides = array<i32>} : memref<2x1xf32, #tpu.memory_space<vmem>>, vector<1x1xf32>,
    %c1_170 = arith.constant 1 : index
    %c0_171 = arith.constant 0 : index
    %c0_172 = arith.constant 0 : index
    %210 = vector.load %arg10[%c1_170, %c0_171, %c0_172] : memref<2x4x64xf32, #tpu.memory_space<vmem>>, vector<1x4x64xf32>
    %211 = vector.shape_cast %210 : vector<1x4x64xf32> to vector<4x64xf32>
    %212 = vector.shape_cast %193 : vector<4x64xf32> to vector<1x4x64xf32>
    tpu.vector_store %arg10[%c1_170, %c0_171, %c0_172], %212 {strides = array<i32>} : memref<2x4x64xf32, #tpu.memory_space<vmem>>, vector<1x4x64xf32>,
    %213 = arith.mulf %193, %194 : vector<4x64xf32>
    %cst_173 = arith.constant dense<0.000000e+00> : vector<4xf32>
    %214 = vector.multi_reduction <add>, %213, %cst_173 [1] : vector<4x64xf32> to vector<4xf32>
    %215 = vector.shape_cast %214 : vector<4xf32> to vector<4x1xf32>
    %cst_174 = arith.constant dense<0.000000e+00> : vector<1xf32>
    %216 = vector.multi_reduction <add>, %215, %cst_174 [0] : vector<4x1xf32> to vector<1xf32>
    %217 = vector.shape_cast %216 : vector<1xf32> to vector<1x1xf32>
    %c1_175 = arith.constant 1 : index
    %c0_176 = arith.constant 0 : index
    %218 = vector.load %arg11[%c1_175, %c0_176] : memref<2x1xf32, #tpu.memory_space<vmem>>, vector<1x1xf32>
    tpu.vector_store %arg11[%c1_175, %c0_176], %217 {strides = array<i32>} : memref<2x1xf32, #tpu.memory_space<vmem>>, vector<1x1xf32>,
    %219 = arith.negf %217 : vector<1x1xf32>
    %220 = math.exp %219 : vector<1x1xf32>
    %cst_177 = arith.constant 1.000000e+00 : f32
    %221 = vector.broadcast %cst_177 : f32 to vector<1x1xf32>
    %222 = arith.addf %221, %220 : vector<1x1xf32>
    %223 = arith.divf %221, %222 : vector<1x1xf32>
    %c1_178 = arith.constant 1 : index
    %c0_179 = arith.constant 0 : index
    %224 = vector.load %arg12[%c1_178, %c0_179] : memref<2x1xf32, #tpu.memory_space<vmem>>, vector<1x1xf32>
    tpu.vector_store %arg12[%c1_178, %c0_179], %223 {strides = array<i32>} : memref<2x1xf32, #tpu.memory_space<vmem>>, vector<1x1xf32>,
    %225 = arith.addf %202, %217 : vector<1x1xf32>
    %cst_180 = arith.constant 5.000000e-01 : f32
    %226 = vector.broadcast %cst_180 : f32 to vector<1x1xf32>
    %227 = arith.mulf %225, %226 : vector<1x1xf32>
    %c0_181 = arith.constant 0 : index
    %c0_182 = arith.constant 0 : index
    %228 = vector.load %arg13[%c0_181, %c0_182] : memref<1x1xf32, #tpu.memory_space<vmem>>, vector<1x1xf32>
    tpu.vector_store %arg13[%c0_181, %c0_182], %227 {strides = array<i32>} : memref<1x1xf32, #tpu.memory_space<vmem>>, vector<1x1xf32>,
    return
  }
}

</mosaic_0001>

<llo_original>
// kernel: _lambda_.1
$region0: #{_lambda_.1}
  #allocation0 [shape = 'u32[]', space=smem, size = 0x4, offset = 0x4, fixed_abs, tag = 'smem constant byte address 0x4 - core index']
  #allocation1 [shape = 'u32[144,128]{1,0:T(1,128)}', space=vmem, size = 0x12000, scoped, tag = 'internal scratch']
  %s0 = inlined_call_operand.vmem [shape: bf16[2,16,64], index: 0, kind: input, shape index: {}]
  %s1 = inlined_call_operand.vmem [shape: bf16[4,8,16], index: 1, kind: input, shape index: {}]
  %s2 = inlined_call_operand.vmem [shape: bf16[4,64,64], index: 2, kind: input, shape index: {}]
  %s3 = inlined_call_operand.vmem [shape: bf16[4,4,8], index: 3, kind: input, shape index: {}]
  %s4 = inlined_call_operand.vmem [shape: bf16[4,64,64], index: 4, kind: input, shape index: {}]
  %s5 = inlined_call_operand.vmem [shape: f32[1,16], index: 5, kind: input, shape index: {}]
  %s6 = inlined_call_operand.vmem [shape: f32[1,16], index: 6, kind: input, shape index: {}]
  %s7 = inlined_call_operand.vmem [shape: f32[64,16], index: 7, kind: input, shape index: {}]
  %s8 = inlined_call_operand.vmem [shape: f32[16,64], index: 8, kind: input, shape index: {}]
  %s9 = inlined_call_operand.vmem [shape: f32[4,64], index: 9, kind: input, shape index: {}]
  %s10 = inlined_call_operand.vmem [shape: f32[2,4,64], index: 10, kind: output, shape index: {0}]
  %s11 = inlined_call_operand.vmem [shape: f32[2,1], index: 11, kind: output, shape index: {1}]
  %s12 = inlined_call_operand.vmem [shape: f32[2,1], index: 12, kind: output, shape index: {2}]
  %s13 = inlined_call_operand.hbm [shape: f32[1,1], index: 13, kind: output, shape index: {3}]
  %14 = xla_tuple %s10, %s11, %s12, %s13
  %s15 = sld [smem:[#allocation0]]
  $region74: #{_lambda_.1} parent=0
    _
  %s17 = ssub.s32 1, %s15
  %s18 = scalar_select 0, %s17, %s15
  $region1: #{_lambda_.1} parent=0
    #allocation2 [shape = 'u8[512]{0}', space=vmem, size = 0x400, scoped, tag = 'output window, operand 3, single buffered']
    #allocation3 [shape = 's32[1]{0}', space=sflag, size = 0x4, scoped, tag = 'scoped memory for _lambda_.1']
    %19 = vsyncpa [#allocation3], 0
    // Predicated region
    $region2: #{_lambda_.1} parent=1 // pred_check
      _
    $region3: #{_lambda_.1} parent=1 // pred_check_branch
      %21 = sbr.rel (0) target = $region5
    $region4: #{_lambda_.1} parent=1 // pred_region
      _
    $region5: #{_lambda_.1} parent=1 // pred_fallthru
      _
    // Predicated region
    $region6: #{_lambda_.1} parent=1 // pred_check
      _
    $region7: #{_lambda_.1} parent=1 // pred_check_branch
      %23 = sbr.rel (0) target = $region9
    $region8: #{_lambda_.1} parent=1 // pred_region
      _
    $region9: #{_lambda_.1} parent=1 // pred_fallthru
      _
    // Predicated region
    $region10: #{_lambda_.1} parent=1 // pred_check
      _
    $region11: #{_lambda_.1} parent=1 // pred_check_branch
      %25 = sbr.rel (0) target = $region13
    $region12: #{_lambda_.1} parent=1 // pred_region
      _
    $region13: #{_lambda_.1} parent=1 // pred_fallthru
      _
    // Predicated region
    $region14: #{_lambda_.1} parent=1 // pred_check
      _
    $region15: #{_lambda_.1} parent=1 // pred_check_branch
      %27 = sbr.rel (0) target = $region17
    $region16: #{_lambda_.1} parent=1 // pred_region
      _
    $region17: #{_lambda_.1} parent=1 // pred_fallthru
      _
    // Predicated region
    $region18: #{_lambda_.1} parent=1 // pred_check
      _
    $region19: #{_lambda_.1} parent=1 // pred_check_branch
      %29 = sbr.rel (0) target = $region21
    $region20: #{_lambda_.1} parent=1 // pred_region
      _
    $region21: #{_lambda_.1} parent=1 // pred_fallthru
      _
    // Predicated region
    $region22: #{_lambda_.1} parent=1 // pred_check
      _
    $region23: #{_lambda_.1} parent=1 // pred_check_branch
      %31 = sbr.rel (0) target = $region25
    $region24: #{_lambda_.1} parent=1 // pred_region
      _
    $region25: #{_lambda_.1} parent=1 // pred_fallthru
      _
    // Predicated region
    $region26: #{_lambda_.1} parent=1 // pred_check
      _
    $region27: #{_lambda_.1} parent=1 // pred_check_branch
      %33 = sbr.rel (0) target = $region29
    $region28: #{_lambda_.1} parent=1 // pred_region
      _
    $region29: #{_lambda_.1} parent=1 // pred_fallthru
      _
    // Predicated region
    $region30: #{_lambda_.1} parent=1 // pred_check
      _
    $region31: #{_lambda_.1} parent=1 // pred_check_branch
      %35 = sbr.rel (0) target = $region33
    $region32: #{_lambda_.1} parent=1 // pred_region
      _
    $region33: #{_lambda_.1} parent=1 // pred_fallthru
      _
    // Predicated region
    $region34: #{_lambda_.1} parent=1 // pred_check
      _
    $region35: #{_lambda_.1} parent=1 // pred_check_branch
      %37 = sbr.rel (0) target = $region37
    $region36: #{_lambda_.1} parent=1 // pred_region
      _
    $region37: #{_lambda_.1} parent=1 // pred_fallthru
      _
    // Predicated region
    $region38: #{_lambda_.1} parent=1 // pred_check
      _
    $region39: #{_lambda_.1} parent=1 // pred_check_branch
      %39 = sbr.rel (0) target = $region41
    $region40: #{_lambda_.1} parent=1 // pred_region
      _
    $region41: #{_lambda_.1} parent=1 // pred_fallthru
      _
    %v41 = vld [vmem:[%s0] sm:$0xf]
    %v42 = vld [vmem:[%s0 + $0x4] sm:$0xf]
    %v43 = vld [vmem:[%s1] sm:$0xf]
    %v46 = vunpack.c.l.b16 %v41
    %v47 = vunpack.c.l.b16 %v42
    %v48 = vpack.c.b16 %v47, %v46
    %vm50 = vcmask 130048
    %v52 = vsel %vm50, %v43, 0
    %54 = vmatprep.subr.bf16.mxu0 0
    %55 = vmatpush1.bf16.msra.mxu0 0
    %56 = vmatprep.subr.bf16.mxu0 0
    %57 = vmatpush1.bf16.msra.mxu0 0
    %58 = vmatprep.subr.bf16.mxu0 0
    %59 = vmatpush1.bf16.msra.mxu0 0
    %60 = vmatprep.subr.bf16.mxu0 0
    %61 = vmatpush1.bf16.msra.mxu0 0
    %62 = vmatprep.subr.bf16.mxu0 0
    %63 = vmatpush1.bf16.msra.mxu0 0
    %64 = vmatprep.subr.bf16.mxu0 0
    %65 = vmatpush1.bf16.msra.mxu0 0
    %66 = vmatprep.subr.bf16.mxu0 0
    %67 = vmatpush1.bf16.msra.mxu0 0
    %68 = vmatprep.subr.bf16.mxu0 0
    %69 = vmatpush1.bf16.msra.mxu0 %v48
    %70 = vmatprep.subr.bf16.mxu0 0
    %71 = vmatpush2.bf16.msra.mxu0 0
    %72 = vmatprep.subr.bf16.mxu0 0
    %73 = vmatpush2.bf16.msra.mxu0 0
    %74 = vmatprep.subr.bf16.mxu0 0
    %75 = vmatpush2.bf16.msra.mxu0 0
    %76 = vmatprep.subr.bf16.mxu0 0
    %77 = vmatpush2.bf16.msra.mxu0 0
    %78 = vmatprep.subr.bf16.mxu0 0
    %79 = vmatpush2.bf16.msra.mxu0 0
    %80 = vmatprep.subr.bf16.mxu0 0
    %81 = vmatpush2.bf16.msra.mxu0 0
    %82 = vmatprep.subr.bf16.mxu0 0
    %83 = vmatpush2.bf16.msra.mxu0 0
    %84 = vmatprep.subr.bf16.mxu0 0
    %85 = vmatpush2.bf16.msra.mxu0 0
    %86 = vmatprep.mubr.bf16.mxu0 0
    %87 = vmatmul.mubr.bf16.gmra.mxu0 %v52
    %v88 = vpop.f32.mrf.mxu0
    %v89 = vadd.f32 0.0, %v88
    %v90 = vpop.f32.mrf.mxu0
    %v91 = vpop.f32.mrf.mxu0
    %v92 = vpop.f32.mrf.mxu0
    %93 = vdwg.mxu0
    %v94 = vpack.c.bf16 %v89, %v89
    %v95 = vld [vmem:[%s2] sm:$0xf]
    %v96 = vld [vmem:[%s2 + $0x4] sm:$0xf]
    %v97 = vld [vmem:[%s2 + $0x8] sm:$0xf]
    %v98 = vld [vmem:[%s2 + $0xc] sm:$0xf]
    %v99 = vld [vmem:[%s2 + $0x10] sm:$0xf]
    %v100 = vld [vmem:[%s2 + $0x14] sm:$0xf]
    %v101 = vld [vmem:[%s2 + $0x18] sm:$0xf]
    %v102 = vld [vmem:[%s2 + $0x1c] sm:$0xf]
    %s103 = scalar_lea.vmem %s1, 4
    %v104 = vld [vmem:[%s103] sm:$0xf]
    %v106 = vsel %vm50, %v104, 0
    %108 = vmatprep.subr.bf16.mxu0 0
    %109 = vmatpush1.bf16.msra.mxu0 0
    %110 = vmatprep.subr.bf16.mxu0 0
    %111 = vmatpush1.bf16.msra.mxu0 0
    %112 = vmatprep.subr.bf16.mxu0 0
    %113 = vmatpush1.bf16.msra.mxu0 0
    %114 = vmatprep.subr.bf16.mxu0 0
    %115 = vmatpush1.bf16.msra.mxu0 0
    %116 = vmatprep.subr.bf16.mxu0 0
    %117 = vmatpush1.bf16.msra.mxu0 0
    %118 = vmatprep.subr.bf16.mxu0 0
    %119 = vmatpush1.bf16.msra.mxu0 0
    %120 = vmatprep.subr.bf16.mxu0 0
    %121 = vmatpush1.bf16.msra.mxu0 0
    %122 = vmatprep.subr.bf16.mxu0 0
    %123 = vmatpush1.bf16.msra.mxu0 %v48
    %124 = vmatprep.subr.bf16.mxu0 0
    %125 = vmatpush2.bf16.msra.mxu0 0
    %126 = vmatprep.subr.bf16.mxu0 0
    %127 = vmatpush2.bf16.msra.mxu0 0
    %128 = vmatprep.subr.bf16.mxu0 0
    %129 = vmatpush2.bf16.msra.mxu0 0
    %130 = vmatprep.subr.bf16.mxu0 0
    %131 = vmatpush2.bf16.msra.mxu0 0
    %132 = vmatprep.subr.bf16.mxu0 0
    %133 = vmatpush2.bf16.msra.mxu0 0
    %134 = vmatprep.subr.bf16.mxu0 0
    %135 = vmatpush2.bf16.msra.mxu0 0
    %136 = vmatprep.subr.bf16.mxu0 0
    %137 = vmatpush2.bf16.msra.mxu0 0
    %138 = vmatprep.subr.bf16.mxu0 0
    %139 = vmatpush2.bf16.msra.mxu0 0
    %140 = vmatprep.mubr.bf16.mxu0 0
    %141 = vmatmul.mubr.bf16.gmra.mxu0 %v106
    %v142 = vpop.f32.mrf.mxu0
    %v143 = vadd.f32 0.0, %v142
    %v144 = vpop.f32.mrf.mxu0
    %v145 = vpop.f32.mrf.mxu0
    %v146 = vpop.f32.mrf.mxu0
    %147 = vdwg.mxu0
    %v148 = vpack.c.bf16 %v143, %v143
    %s149 = scalar_lea.vmem %s2, 32
    %v150 = vld [vmem:[%s149] sm:$0xf]
    %v151 = vld [vmem:[%s149 + $0x4] sm:$0xf]
    %v152 = vld [vmem:[%s149 + $0x8] sm:$0xf]
    %v153 = vld [vmem:[%s149 + $0xc] sm:$0xf]
    %v154 = vld [vmem:[%s149 + $0x10] sm:$0xf]
    %v155 = vld [vmem:[%s149 + $0x14] sm:$0xf]
    %v156 = vld [vmem:[%s149 + $0x18] sm:$0xf]
    %v157 = vld [vmem:[%s149 + $0x1c] sm:$0xf]
    %v166 = vunpack.c.l.b16 %v150
    %v167 = vunpack.c.l.b16 %v151
    %v168 = vunpack.c.l.b16 %v152
    %v169 = vunpack.c.l.b16 %v153
    %v170 = vunpack.c.l.b16 %v154
    %v171 = vunpack.c.l.b16 %v155
    %v172 = vunpack.c.l.b16 %v156
    %v173 = vunpack.c.l.b16 %v157
    %v174 = vpack.c.b16 %v167, %v166
    %v175 = vpack.c.b16 %v169, %v168
    %v176 = vpack.c.b16 %v171, %v170
    %v177 = vpack.c.b16 %v173, %v172
    %vm182 = vcmask 523264
    %v184 = vsel %vm182, %v148, 0
    %186 = vmatprep.subr.bf16.mxu0 0
    %187 = vmatpush1.bf16.msra.mxu0 0
    %188 = vmatprep.subr.bf16.mxu0 0
    %189 = vmatpush1.bf16.msra.mxu0 0
    %190 = vmatprep.subr.bf16.mxu0 0
    %191 = vmatpush1.bf16.msra.mxu0 0
    %192 = vmatprep.subr.bf16.mxu0 0
    %193 = vmatpush1.bf16.msra.mxu0 0
    %194 = vmatprep.subr.bf16.mxu0 0
    %195 = vmatpush1.bf16.msra.mxu0 %v177
    %196 = vmatprep.subr.bf16.mxu0 0
    %197 = vmatpush1.bf16.msra.mxu0 %v176
    %198 = vmatprep.subr.bf16.mxu0 0
    %199 = vmatpush1.bf16.msra.mxu0 %v175
    %200 = vmatprep.subr.bf16.mxu0 0
    %201 = vmatpush1.bf16.msra.mxu0 %v174
    %202 = vmatprep.subr.bf16.mxu0 0
    %203 = vmatpush2.bf16.msra.mxu0 0
    %204 = vmatprep.subr.bf16.mxu0 0
    %205 = vmatpush2.bf16.msra.mxu0 0
    %206 = vmatprep.subr.bf16.mxu0 0
    %207 = vmatpush2.bf16.msra.mxu0 0
    %208 = vmatprep.subr.bf16.mxu0 0
    %209 = vmatpush2.bf16.msra.mxu0 0
    %210 = vmatprep.subr.bf16.mxu0 0
    %211 = vmatpush2.bf16.msra.mxu0 0
    %212 = vmatprep.subr.bf16.mxu0 0
    %213 = vmatpush2.bf16.msra.mxu0 0
    %214 = vmatprep.subr.bf16.mxu0 0
    %215 = vmatpush2.bf16.msra.mxu0 0
    %216 = vmatprep.subr.bf16.mxu0 0
    %217 = vmatpush2.bf16.msra.mxu0 0
    %218 = vmatprep.mubr.bf16.mxu0 0
    %219 = vmatmul.mubr.bf16.gmra.mxu0 %v184
    %v220 = vpop.f32.mrf.mxu0
    %v221 = vadd.f32 0.0, %v220
    %v222 = vpop.f32.mrf.mxu0
    %v223 = vpop.f32.mrf.mxu0
    %v224 = vpop.f32.mrf.mxu0
    %225 = vdwg.mxu0
    %v234 = vunpack.c.l.b16 %v95
    %v235 = vunpack.c.l.b16 %v96
    %v236 = vunpack.c.l.b16 %v97
    %v237 = vunpack.c.l.b16 %v98
    %v238 = vunpack.c.l.b16 %v99
    %v239 = vunpack.c.l.b16 %v100
    %v240 = vunpack.c.l.b16 %v101
    %v241 = vunpack.c.l.b16 %v102
    %v242 = vpack.c.b16 %v235, %v234
    %v243 = vpack.c.b16 %v237, %v236
    %v244 = vpack.c.b16 %v239, %v238
    %v245 = vpack.c.b16 %v241, %v240
    %v251 = vsel %vm182, %v94, 0
    %253 = vmatprep.subr.bf16.mxu0 0
    %254 = vmatpush1.bf16.msra.mxu0 0
    %255 = vmatprep.subr.bf16.mxu0 0
    %256 = vmatpush1.bf16.msra.mxu0 0
    %257 = vmatprep.subr.bf16.mxu0 0
    %258 = vmatpush1.bf16.msra.mxu0 0
    %259 = vmatprep.subr.bf16.mxu0 0
    %260 = vmatpush1.bf16.msra.mxu0 0
    %261 = vmatprep.subr.bf16.mxu0 0
    %262 = vmatpush1.bf16.msra.mxu0 %v245
    %263 = vmatprep.subr.bf16.mxu0 0
    %264 = vmatpush1.bf16.msra.mxu0 %v244
    %265 = vmatprep.subr.bf16.mxu0 0
    %266 = vmatpush1.bf16.msra.mxu0 %v243
    %267 = vmatprep.subr.bf16.mxu0 0
    %268 = vmatpush1.bf16.msra.mxu0 %v242
    %269 = vmatprep.subr.bf16.mxu0 0
    %270 = vmatpush2.bf16.msra.mxu0 0
    %271 = vmatprep.subr.bf16.mxu0 0
    %272 = vmatpush2.bf16.msra.mxu0 0
    %273 = vmatprep.subr.bf16.mxu0 0
    %274 = vmatpush2.bf16.msra.mxu0 0
    %275 = vmatprep.subr.bf16.mxu0 0
    %276 = vmatpush2.bf16.msra.mxu0 0
    %277 = vmatprep.subr.bf16.mxu0 0
    %278 = vmatpush2.bf16.msra.mxu0 0
    %279 = vmatprep.subr.bf16.mxu0 0
    %280 = vmatpush2.bf16.msra.mxu0 0
    %281 = vmatprep.subr.bf16.mxu0 0
    %282 = vmatpush2.bf16.msra.mxu0 0
    %283 = vmatprep.subr.bf16.mxu0 0
    %284 = vmatpush2.bf16.msra.mxu0 0
    %285 = vmatprep.mubr.bf16.mxu0 0
    %286 = vmatmul.mubr.bf16.gmra.mxu0 %v251
    %v287 = vpop.f32.mrf.mxu0
    %v288 = vadd.f32 %v221, %v287
    %v289 = vpop.f32.mrf.mxu0
    %v290 = vpop.f32.mrf.mxu0
    %v291 = vpop.f32.mrf.mxu0
    %292 = vdwg.mxu0
    %s293 = scalar_lea.vmem %s1, 8
    %v294 = vld [vmem:[%s293] sm:$0xf]
    %v296 = vsel %vm50, %v294, 0
    %298 = vmatprep.subr.bf16.mxu0 0
    %299 = vmatpush1.bf16.msra.mxu0 0
    %300 = vmatprep.subr.bf16.mxu0 0
    %301 = vmatpush1.bf16.msra.mxu0 0
    %302 = vmatprep.subr.bf16.mxu0 0
    %303 = vmatpush1.bf16.msra.mxu0 0
    %304 = vmatprep.subr.bf16.mxu0 0
    %305 = vmatpush1.bf16.msra.mxu0 0
    %306 = vmatprep.subr.bf16.mxu0 0
    %307 = vmatpush1.bf16.msra.mxu0 0
    %308 = vmatprep.subr.bf16.mxu0 0
    %309 = vmatpush1.bf16.msra.mxu0 0
    %310 = vmatprep.subr.bf16.mxu0 0
    %311 = vmatpush1.bf16.msra.mxu0 0
    %312 = vmatprep.subr.bf16.mxu0 0
    %313 = vmatpush1.bf16.msra.mxu0 %v48
    %314 = vmatprep.subr.bf16.mxu0 0
    %315 = vmatpush2.bf16.msra.mxu0 0
    %316 = vmatprep.subr.bf16.mxu0 0
    %317 = vmatpush2.bf16.msra.mxu0 0
    %318 = vmatprep.subr.bf16.mxu0 0
    %319 = vmatpush2.bf16.msra.mxu0 0
    %320 = vmatprep.subr.bf16.mxu0 0
    %321 = vmatpush2.bf16.msra.mxu0 0
    %322 = vmatprep.subr.bf16.mxu0 0
    %323 = vmatpush2.bf16.msra.mxu0 0
    %324 = vmatprep.subr.bf16.mxu0 0
    %325 = vmatpush2.bf16.msra.mxu0 0
    %326 = vmatprep.subr.bf16.mxu0 0
    %327 = vmatpush2.bf16.msra.mxu0 0
    %328 = vmatprep.subr.bf16.mxu0 0
    %329 = vmatpush2.bf16.msra.mxu0 0
    %330 = vmatprep.mubr.bf16.mxu0 0
    %331 = vmatmul.mubr.bf16.gmra.mxu0 %v296
    %v332 = vpop.f32.mrf.mxu0
    %v333 = vadd.f32 0.0, %v332
    %v334 = vpop.f32.mrf.mxu0
    %v335 = vpop.f32.mrf.mxu0
    %v336 = vpop.f32.mrf.mxu0
    %337 = vdwg.mxu0
    %v338 = vpack.c.bf16 %v333, %v333
    %s339 = scalar_lea.vmem %s2, 64
    %v340 = vld [vmem:[%s339] sm:$0xf]
    %v341 = vld [vmem:[%s339 + $0x4] sm:$0xf]
    %v342 = vld [vmem:[%s339 + $0x8] sm:$0xf]
    %v343 = vld [vmem:[%s339 + $0xc] sm:$0xf]
    %v344 = vld [vmem:[%s339 + $0x10] sm:$0xf]
    %v345 = vld [vmem:[%s339 + $0x14] sm:$0xf]
    %v346 = vld [vmem:[%s339 + $0x18] sm:$0xf]
    %v347 = vld [vmem:[%s339 + $0x1c] sm:$0xf]
    %v356 = vunpack.c.l.b16 %v340
    %v357 = vunpack.c.l.b16 %v341
    %v358 = vunpack.c.l.b16 %v342
    %v359 = vunpack.c.l.b16 %v343
    %v360 = vunpack.c.l.b16 %v344
    %v361 = vunpack.c.l.b16 %v345
    %v362 = vunpack.c.l.b16 %v346
    %v363 = vunpack.c.l.b16 %v347
    %v364 = vpack.c.b16 %v357, %v356
    %v365 = vpack.c.b16 %v359, %v358
    %v366 = vpack.c.b16 %v361, %v360
    %v367 = vpack.c.b16 %v363, %v362
    %v373 = vsel %vm182, %v338, 0
    %375 = vmatprep.subr.bf16.mxu0 0
    %376 = vmatpush1.bf16.msra.mxu0 0
    %377 = vmatprep.subr.bf16.mxu0 0
    %378 = vmatpush1.bf16.msra.mxu0 0
    %379 = vmatprep.subr.bf16.mxu0 0
    %380 = vmatpush1.bf16.msra.mxu0 0
    %381 = vmatprep.subr.bf16.mxu0 0
    %382 = vmatpush1.bf16.msra.mxu0 0
    %383 = vmatprep.subr.bf16.mxu0 0
    %384 = vmatpush1.bf16.msra.mxu0 %v367
    %385 = vmatprep.subr.bf16.mxu0 0
    %386 = vmatpush1.bf16.msra.mxu0 %v366
    %387 = vmatprep.subr.bf16.mxu0 0
    %388 = vmatpush1.bf16.msra.mxu0 %v365
    %389 = vmatprep.subr.bf16.mxu0 0
    %390 = vmatpush1.bf16.msra.mxu0 %v364
    %391 = vmatprep.subr.bf16.mxu0 0
    %392 = vmatpush2.bf16.msra.mxu0 0
    %393 = vmatprep.subr.bf16.mxu0 0
    %394 = vmatpush2.bf16.msra.mxu0 0
    %395 = vmatprep.subr.bf16.mxu0 0
    %396 = vmatpush2.bf16.msra.mxu0 0
    %397 = vmatprep.subr.bf16.mxu0 0
    %398 = vmatpush2.bf16.msra.mxu0 0
    %399 = vmatprep.subr.bf16.mxu0 0
    %400 = vmatpush2.bf16.msra.mxu0 0
    %401 = vmatprep.subr.bf16.mxu0 0
    %402 = vmatpush2.bf16.msra.mxu0 0
    %403 = vmatprep.subr.bf16.mxu0 0
    %404 = vmatpush2.bf16.msra.mxu0 0
    %405 = vmatprep.subr.bf16.mxu0 0
    %406 = vmatpush2.bf16.msra.mxu0 0
    %407 = vmatprep.mubr.bf16.mxu0 0
    %408 = vmatmul.mubr.bf16.gmra.mxu0 %v373
    %v409 = vpop.f32.mrf.mxu0
    %v410 = vadd.f32 0.0, %v409
    %v411 = vpop.f32.mrf.mxu0
    %v412 = vpop.f32.mrf.mxu0
    %v413 = vpop.f32.mrf.mxu0
    %414 = vdwg.mxu0
    %v415 = vadd.f32 %v288, %v410
    %s416 = scalar_lea.vmem %s1, 12
    %v417 = vld [vmem:[%s416] sm:$0xf]
    %v419 = vsel %vm50, %v417, 0
    %421 = vmatprep.subr.bf16.mxu0 0
    %422 = vmatpush1.bf16.msra.mxu0 0
    %423 = vmatprep.subr.bf16.mxu0 0
    %424 = vmatpush1.bf16.msra.mxu0 0
    %425 = vmatprep.subr.bf16.mxu0 0
    %426 = vmatpush1.bf16.msra.mxu0 0
    %427 = vmatprep.subr.bf16.mxu0 0
    %428 = vmatpush1.bf16.msra.mxu0 0
    %429 = vmatprep.subr.bf16.mxu0 0
    %430 = vmatpush1.bf16.msra.mxu0 0
    %431 = vmatprep.subr.bf16.mxu0 0
    %432 = vmatpush1.bf16.msra.mxu0 0
    %433 = vmatprep.subr.bf16.mxu0 0
    %434 = vmatpush1.bf16.msra.mxu0 0
    %435 = vmatprep.subr.bf16.mxu0 0
    %436 = vmatpush1.bf16.msra.mxu0 %v48
    %437 = vmatprep.subr.bf16.mxu0 0
    %438 = vmatpush2.bf16.msra.mxu0 0
    %439 = vmatprep.subr.bf16.mxu0 0
    %440 = vmatpush2.bf16.msra.mxu0 0
    %441 = vmatprep.subr.bf16.mxu0 0
    %442 = vmatpush2.bf16.msra.mxu0 0
    %443 = vmatprep.subr.bf16.mxu0 0
    %444 = vmatpush2.bf16.msra.mxu0 0
    %445 = vmatprep.subr.bf16.mxu0 0
    %446 = vmatpush2.bf16.msra.mxu0 0
    %447 = vmatprep.subr.bf16.mxu0 0
    %448 = vmatpush2.bf16.msra.mxu0 0
    %449 = vmatprep.subr.bf16.mxu0 0
    %450 = vmatpush2.bf16.msra.mxu0 0
    %451 = vmatprep.subr.bf16.mxu0 0
    %452 = vmatpush2.bf16.msra.mxu0 0
    %453 = vmatprep.mubr.bf16.mxu0 0
    %454 = vmatmul.mubr.bf16.gmra.mxu0 %v419
    %v455 = vpop.f32.mrf.mxu0
    %v456 = vadd.f32 0.0, %v455
    %v457 = vpop.f32.mrf.mxu0
    %v458 = vpop.f32.mrf.mxu0
    %v459 = vpop.f32.mrf.mxu0
    %460 = vdwg.mxu0
    %v461 = vpack.c.bf16 %v456, %v456
    %s462 = scalar_lea.vmem %s2, 96
    %v463 = vld [vmem:[%s462] sm:$0xf]
    %v464 = vld [vmem:[%s462 + $0x4] sm:$0xf]
    %v465 = vld [vmem:[%s462 + $0x8] sm:$0xf]
    %v466 = vld [vmem:[%s462 + $0xc] sm:$0xf]
    %v467 = vld [vmem:[%s462 + $0x10] sm:$0xf]
    %v468 = vld [vmem:[%s462 + $0x14] sm:$0xf]
    %v469 = vld [vmem:[%s462 + $0x18] sm:$0xf]
    %v470 = vld [vmem:[%s462 + $0x1c] sm:$0xf]
    %v479 = vunpack.c.l.b16 %v463
    %v480 = vunpack.c.l.b16 %v464
    %v481 = vunpack.c.l.b16 %v465
    %v482 = vunpack.c.l.b16 %v466
    %v483 = vunpack.c.l.b16 %v467
    %v484 = vunpack.c.l.b16 %v468
    %v485 = vunpack.c.l.b16 %v469
    %v486 = vunpack.c.l.b16 %v470
    %v487 = vpack.c.b16 %v480, %v479
    %v488 = vpack.c.b16 %v482, %v481
    %v489 = vpack.c.b16 %v484, %v483
    %v490 = vpack.c.b16 %v486, %v485
    %v496 = vsel %vm182, %v461, 0
    %498 = vmatprep.subr.bf16.mxu0 0
    %499 = vmatpush1.bf16.msra.mxu0 0
    %500 = vmatprep.subr.bf16.mxu0 0
    %501 = vmatpush1.bf16.msra.mxu0 0
    %502 = vmatprep.subr.bf16.mxu0 0
    %503 = vmatpush1.bf16.msra.mxu0 0
    %504 = vmatprep.subr.bf16.mxu0 0
    %505 = vmatpush1.bf16.msra.mxu0 0
    %506 = vmatprep.subr.bf16.mxu0 0
    %507 = vmatpush1.bf16.msra.mxu0 %v490
    %508 = vmatprep.subr.bf16.mxu0 0
    %509 = vmatpush1.bf16.msra.mxu0 %v489
    %510 = vmatprep.subr.bf16.mxu0 0
    %511 = vmatpush1.bf16.msra.mxu0 %v488
    %512 = vmatprep.subr.bf16.mxu0 0
    %513 = vmatpush1.bf16.msra.mxu0 %v487
    %514 = vmatprep.subr.bf16.mxu0 0
    %515 = vmatpush2.bf16.msra.mxu0 0
    %516 = vmatprep.subr.bf16.mxu0 0
    %517 = vmatpush2.bf16.msra.mxu0 0
    %518 = vmatprep.subr.bf16.mxu0 0
    %519 = vmatpush2.bf16.msra.mxu0 0
    %520 = vmatprep.subr.bf16.mxu0 0
    %521 = vmatpush2.bf16.msra.mxu0 0
    %522 = vmatprep.subr.bf16.mxu0 0
    %523 = vmatpush2.bf16.msra.mxu0 0
    %524 = vmatprep.subr.bf16.mxu0 0
    %525 = vmatpush2.bf16.msra.mxu0 0
    %526 = vmatprep.subr.bf16.mxu0 0
    %527 = vmatpush2.bf16.msra.mxu0 0
    %528 = vmatprep.subr.bf16.mxu0 0
    %529 = vmatpush2.bf16.msra.mxu0 0
    %530 = vmatprep.mubr.bf16.mxu0 0
    %531 = vmatmul.mubr.bf16.gmra.mxu0 %v496
    %v532 = vpop.f32.mrf.mxu0
    %v533 = vadd.f32 0.0, %v532
    %v534 = vpop.f32.mrf.mxu0
    %v535 = vpop.f32.mrf.mxu0
    %v536 = vpop.f32.mrf.mxu0
    %537 = vdwg.mxu0
    %v538 = vadd.f32 %v415, %v533
    %vm539 = vcmp.gt.f32.partialorder %v538, 0.0
    %v540 = vmul.f32 %v538, 0.2
    %v541 = vsel %vm539, %v538, %v540
    %s542 = scalar_lea.vmem %s0, 8
    %v543 = vld [vmem:[%s542] sm:$0xf]
    %v544 = vld [vmem:[%s542 + $0x4] sm:$0xf]
    %v547 = vunpack.c.l.b16 %v543
    %v548 = vunpack.c.l.b16 %v544
    %v549 = vpack.c.b16 %v548, %v547
    %551 = vmatprep.subr.bf16.mxu0 0
    %552 = vmatpush1.bf16.msra.mxu0 0
    %553 = vmatprep.subr.bf16.mxu0 0
    %554 = vmatpush1.bf16.msra.mxu0 0
    %555 = vmatprep.subr.bf16.mxu0 0
    %556 = vmatpush1.bf16.msra.mxu0 0
    %557 = vmatprep.subr.bf16.mxu0 0
    %558 = vmatpush1.bf16.msra.mxu0 0
    %559 = vmatprep.subr.bf16.mxu0 0
    %560 = vmatpush1.bf16.msra.mxu0 0
    %561 = vmatprep.subr.bf16.mxu0 0
    %562 = vmatpush1.bf16.msra.mxu0 0
    %563 = vmatprep.subr.bf16.mxu0 0
    %564 = vmatpush1.bf16.msra.mxu0 0
    %565 = vmatprep.subr.bf16.mxu0 0
    %566 = vmatpush1.bf16.msra.mxu0 %v549
    %567 = vmatprep.subr.bf16.mxu0 0
    %568 = vmatpush2.bf16.msra.mxu0 0
    %569 = vmatprep.subr.bf16.mxu0 0
    %570 = vmatpush2.bf16.msra.mxu0 0
    %571 = vmatprep.subr.bf16.mxu0 0
    %572 = vmatpush2.bf16.msra.mxu0 0
    %573 = vmatprep.subr.bf16.mxu0 0
    %574 = vmatpush2.bf16.msra.mxu0 0
    %575 = vmatprep.subr.bf16.mxu0 0
    %576 = vmatpush2.bf16.msra.mxu0 0
    %577 = vmatprep.subr.bf16.mxu0 0
    %578 = vmatpush2.bf16.msra.mxu0 0
    %579 = vmatprep.subr.bf16.mxu0 0
    %580 = vmatpush2.bf16.msra.mxu0 0
    %581 = vmatprep.subr.bf16.mxu0 0
    %582 = vmatpush2.bf16.msra.mxu0 0
    %583 = vmatprep.mubr.bf16.mxu0 0
    %584 = vmatmul.mubr.bf16.gmra.mxu0 %v52
    %v585 = vpop.f32.mrf.mxu0
    %v586 = vadd.f32 0.0, %v585
    %v587 = vpop.f32.mrf.mxu0
    %v588 = vpop.f32.mrf.mxu0
    %v589 = vpop.f32.mrf.mxu0
    %590 = vdwg.mxu0
    %v591 = vpack.c.bf16 %v586, %v586
    %592 = vmatprep.subr.bf16.mxu0 0
    %593 = vmatpush1.bf16.msra.mxu0 0
    %594 = vmatprep.subr.bf16.mxu0 0
    %595 = vmatpush1.bf16.msra.mxu0 0
    %596 = vmatprep.subr.bf16.mxu0 0
    %597 = vmatpush1.bf16.msra.mxu0 0
    %598 = vmatprep.subr.bf16.mxu0 0
    %599 = vmatpush1.bf16.msra.mxu0 0
    %600 = vmatprep.subr.bf16.mxu0 0
    %601 = vmatpush1.bf16.msra.mxu0 0
    %602 = vmatprep.subr.bf16.mxu0 0
    %603 = vmatpush1.bf16.msra.mxu0 0
    %604 = vmatprep.subr.bf16.mxu0 0
    %605 = vmatpush1.bf16.msra.mxu0 0
    %606 = vmatprep.subr.bf16.mxu0 0
    %607 = vmatpush1.bf16.msra.mxu0 %v549
    %608 = vmatprep.subr.bf16.mxu0 0
    %609 = vmatpush2.bf16.msra.mxu0 0
    %610 = vmatprep.subr.bf16.mxu0 0
    %611 = vmatpush2.bf16.msra.mxu0 0
    %612 = vmatprep.subr.bf16.mxu0 0
    %613 = vmatpush2.bf16.msra.mxu0 0
    %614 = vmatprep.subr.bf16.mxu0 0
    %615 = vmatpush2.bf16.msra.mxu0 0
    %616 = vmatprep.subr.bf16.mxu0 0
    %617 = vmatpush2.bf16.msra.mxu0 0
    %618 = vmatprep.subr.bf16.mxu0 0
    %619 = vmatpush2.bf16.msra.mxu0 0
    %620 = vmatprep.subr.bf16.mxu0 0
    %621 = vmatpush2.bf16.msra.mxu0 0
    %622 = vmatprep.subr.bf16.mxu0 0
    %623 = vmatpush2.bf16.msra.mxu0 0
    %624 = vmatprep.mubr.bf16.mxu0 0
    %625 = vmatmul.mubr.bf16.gmra.mxu0 %v106
    %v626 = vpop.f32.mrf.mxu0
    %v627 = vadd.f32 0.0, %v626
    %v628 = vpop.f32.mrf.mxu0
    %v629 = vpop.f32.mrf.mxu0
    %v630 = vpop.f32.mrf.mxu0
    %631 = vdwg.mxu0
    %v632 = vpack.c.bf16 %v627, %v627
    %v634 = vsel %vm182, %v632, 0
    %636 = vmatprep.subr.bf16.mxu0 0
    %637 = vmatpush1.bf16.msra.mxu0 0
    %638 = vmatprep.subr.bf16.mxu0 0
    %639 = vmatpush1.bf16.msra.mxu0 0
    %640 = vmatprep.subr.bf16.mxu0 0
    %641 = vmatpush1.bf16.msra.mxu0 0
    %642 = vmatprep.subr.bf16.mxu0 0
    %643 = vmatpush1.bf16.msra.mxu0 0
    %644 = vmatprep.subr.bf16.mxu0 0
    %645 = vmatpush1.bf16.msra.mxu0 %v177
    %646 = vmatprep.subr.bf16.mxu0 0
    %647 = vmatpush1.bf16.msra.mxu0 %v176
    %648 = vmatprep.subr.bf16.mxu0 0
    %649 = vmatpush1.bf16.msra.mxu0 %v175
    %650 = vmatprep.subr.bf16.mxu0 0
    %651 = vmatpush1.bf16.msra.mxu0 %v174
    %652 = vmatprep.subr.bf16.mxu0 0
    %653 = vmatpush2.bf16.msra.mxu0 0
    %654 = vmatprep.subr.bf16.mxu0 0
    %655 = vmatpush2.bf16.msra.mxu0 0
    %656 = vmatprep.subr.bf16.mxu0 0
    %657 = vmatpush2.bf16.msra.mxu0 0
    %658 = vmatprep.subr.bf16.mxu0 0
    %659 = vmatpush2.bf16.msra.mxu0 0
    %660 = vmatprep.subr.bf16.mxu0 0
    %661 = vmatpush2.bf16.msra.mxu0 0
    %662 = vmatprep.subr.bf16.mxu0 0
    %663 = vmatpush2.bf16.msra.mxu0 0
    %664 = vmatprep.subr.bf16.mxu0 0
    %665 = vmatpush2.bf16.msra.mxu0 0
    %666 = vmatprep.subr.bf16.mxu0 0
    %667 = vmatpush2.bf16.msra.mxu0 0
    %668 = vmatprep.mubr.bf16.mxu0 0
    %669 = vmatmul.mubr.bf16.gmra.mxu0 %v634
    %v670 = vpop.f32.mrf.mxu0
    %v671 = vadd.f32 0.0, %v670
    %v672 = vpop.f32.mrf.mxu0
    %v673 = vpop.f32.mrf.mxu0
    %v674 = vpop.f32.mrf.mxu0
    %675 = vdwg.mxu0
    %v677 = vsel %vm182, %v591, 0
    %679 = vmatprep.subr.bf16.mxu0 0
    %680 = vmatpush1.bf16.msra.mxu0 0
    %681 = vmatprep.subr.bf16.mxu0 0
    %682 = vmatpush1.bf16.msra.mxu0 0
    %683 = vmatprep.subr.bf16.mxu0 0
    %684 = vmatpush1.bf16.msra.mxu0 0
    %685 = vmatprep.subr.bf16.mxu0 0
    %686 = vmatpush1.bf16.msra.mxu0 0
    %687 = vmatprep.subr.bf16.mxu0 0
    %688 = vmatpush1.bf16.msra.mxu0 %v245
    %689 = vmatprep.subr.bf16.mxu0 0
    %690 = vmatpush1.bf16.msra.mxu0 %v244
    %691 = vmatprep.subr.bf16.mxu0 0
    %692 = vmatpush1.bf16.msra.mxu0 %v243
    %693 = vmatprep.subr.bf16.mxu0 0
    %694 = vmatpush1.bf16.msra.mxu0 %v242
    %695 = vmatprep.subr.bf16.mxu0 0
    %696 = vmatpush2.bf16.msra.mxu0 0
    %697 = vmatprep.subr.bf16.mxu0 0
    %698 = vmatpush2.bf16.msra.mxu0 0
    %699 = vmatprep.subr.bf16.mxu0 0
    %700 = vmatpush2.bf16.msra.mxu0 0
    %701 = vmatprep.subr.bf16.mxu0 0
    %702 = vmatpush2.bf16.msra.mxu0 0
    %703 = vmatprep.subr.bf16.mxu0 0
    %704 = vmatpush2.bf16.msra.mxu0 0
    %705 = vmatprep.subr.bf16.mxu0 0
    %706 = vmatpush2.bf16.msra.mxu0 0
    %707 = vmatprep.subr.bf16.mxu0 0
    %708 = vmatpush2.bf16.msra.mxu0 0
    %709 = vmatprep.subr.bf16.mxu0 0
    %710 = vmatpush2.bf16.msra.mxu0 0
    %711 = vmatprep.mubr.bf16.mxu0 0
    %712 = vmatmul.mubr.bf16.gmra.mxu0 %v677
    %v713 = vpop.f32.mrf.mxu0
    %v714 = vadd.f32 %v671, %v713
    %v715 = vpop.f32.mrf.mxu0
    %v716 = vpop.f32.mrf.mxu0
    %v717 = vpop.f32.mrf.mxu0
    %718 = vdwg.mxu0
    %719 = vmatprep.subr.bf16.mxu0 0
    %720 = vmatpush1.bf16.msra.mxu0 0
    %721 = vmatprep.subr.bf16.mxu0 0
    %722 = vmatpush1.bf16.msra.mxu0 0
    %723 = vmatprep.subr.bf16.mxu0 0
    %724 = vmatpush1.bf16.msra.mxu0 0
    %725 = vmatprep.subr.bf16.mxu0 0
    %726 = vmatpush1.bf16.msra.mxu0 0
    %727 = vmatprep.subr.bf16.mxu0 0
    %728 = vmatpush1.bf16.msra.mxu0 0
    %729 = vmatprep.subr.bf16.mxu0 0
    %730 = vmatpush1.bf16.msra.mxu0 0
    %731 = vmatprep.subr.bf16.mxu0 0
    %732 = vmatpush1.bf16.msra.mxu0 0
    %733 = vmatprep.subr.bf16.mxu0 0
    %734 = vmatpush1.bf16.msra.mxu0 %v549
    %735 = vmatprep.subr.bf16.mxu0 0
    %736 = vmatpush2.bf16.msra.mxu0 0
    %737 = vmatprep.subr.bf16.mxu0 0
    %738 = vmatpush2.bf16.msra.mxu0 0
    %739 = vmatprep.subr.bf16.mxu0 0
    %740 = vmatpush2.bf16.msra.mxu0 0
    %741 = vmatprep.subr.bf16.mxu0 0
    %742 = vmatpush2.bf16.msra.mxu0 0
    %743 = vmatprep.subr.bf16.mxu0 0
    %744 = vmatpush2.bf16.msra.mxu0 0
    %745 = vmatprep.subr.bf16.mxu0 0
    %746 = vmatpush2.bf16.msra.mxu0 0
    %747 = vmatprep.subr.bf16.mxu0 0
    %748 = vmatpush2.bf16.msra.mxu0 0
    %749 = vmatprep.subr.bf16.mxu0 0
    %750 = vmatpush2.bf16.msra.mxu0 0
    %751 = vmatprep.mubr.bf16.mxu0 0
    %752 = vmatmul.mubr.bf16.gmra.mxu0 %v296
    %v753 = vpop.f32.mrf.mxu0
    %v754 = vadd.f32 0.0, %v753
    %v755 = vpop.f32.mrf.mxu0
    %v756 = vpop.f32.mrf.mxu0
    %v757 = vpop.f32.mrf.mxu0
    %758 = vdwg.mxu0
    %v759 = vpack.c.bf16 %v754, %v754
    %v761 = vsel %vm182, %v759, 0
    %763 = vmatprep.subr.bf16.mxu0 0
    %764 = vmatpush1.bf16.msra.mxu0 0
    %765 = vmatprep.subr.bf16.mxu0 0
    %766 = vmatpush1.bf16.msra.mxu0 0
    %767 = vmatprep.subr.bf16.mxu0 0
    %768 = vmatpush1.bf16.msra.mxu0 0
    %769 = vmatprep.subr.bf16.mxu0 0
    %770 = vmatpush1.bf16.msra.mxu0 0
    %771 = vmatprep.subr.bf16.mxu0 0
    %772 = vmatpush1.bf16.msra.mxu0 %v367
    %773 = vmatprep.subr.bf16.mxu0 0
    %774 = vmatpush1.bf16.msra.mxu0 %v366
    %775 = vmatprep.subr.bf16.mxu0 0
    %776 = vmatpush1.bf16.msra.mxu0 %v365
    %777 = vmatprep.subr.bf16.mxu0 0
    %778 = vmatpush1.bf16.msra.mxu0 %v364
    %779 = vmatprep.subr.bf16.mxu0 0
    %780 = vmatpush2.bf16.msra.mxu0 0
    %781 = vmatprep.subr.bf16.mxu0 0
    %782 = vmatpush2.bf16.msra.mxu0 0
    %783 = vmatprep.subr.bf16.mxu0 0
    %784 = vmatpush2.bf16.msra.mxu0 0
    %785 = vmatprep.subr.bf16.mxu0 0
    %786 = vmatpush2.bf16.msra.mxu0 0
    %787 = vmatprep.subr.bf16.mxu0 0
    %788 = vmatpush2.bf16.msra.mxu0 0
    %789 = vmatprep.subr.bf16.mxu0 0
    %790 = vmatpush2.bf16.msra.mxu0 0
    %791 = vmatprep.subr.bf16.mxu0 0
    %792 = vmatpush2.bf16.msra.mxu0 0
    %793 = vmatprep.subr.bf16.mxu0 0
    %794 = vmatpush2.bf16.msra.mxu0 0
    %795 = vmatprep.mubr.bf16.mxu0 0
    %796 = vmatmul.mubr.bf16.gmra.mxu0 %v761
    %v797 = vpop.f32.mrf.mxu0
    %v798 = vadd.f32 0.0, %v797
    %v799 = vpop.f32.mrf.mxu0
    %v800 = vpop.f32.mrf.mxu0
    %v801 = vpop.f32.mrf.mxu0
    %802 = vdwg.mxu0
    %v803 = vadd.f32 %v714, %v798
    %804 = vmatprep.subr.bf16.mxu0 0
    %805 = vmatpush1.bf16.msra.mxu0 0
    %806 = vmatprep.subr.bf16.mxu0 0
    %807 = vmatpush1.bf16.msra.mxu0 0
    %808 = vmatprep.subr.bf16.mxu0 0
    %809 = vmatpush1.bf16.msra.mxu0 0
    %810 = vmatprep.subr.bf16.mxu0 0
    %811 = vmatpush1.bf16.msra.mxu0 0
    %812 = vmatprep.subr.bf16.mxu0 0
    %813 = vmatpush1.bf16.msra.mxu0 0
    %814 = vmatprep.subr.bf16.mxu0 0
    %815 = vmatpush1.bf16.msra.mxu0 0
    %816 = vmatprep.subr.bf16.mxu0 0
    %817 = vmatpush1.bf16.msra.mxu0 0
    %818 = vmatprep.subr.bf16.mxu0 0
    %819 = vmatpush1.bf16.msra.mxu0 %v549
    %820 = vmatprep.subr.bf16.mxu0 0
    %821 = vmatpush2.bf16.msra.mxu0 0
    %822 = vmatprep.subr.bf16.mxu0 0
    %823 = vmatpush2.bf16.msra.mxu0 0
    %824 = vmatprep.subr.bf16.mxu0 0
    %825 = vmatpush2.bf16.msra.mxu0 0
    %826 = vmatprep.subr.bf16.mxu0 0
    %827 = vmatpush2.bf16.msra.mxu0 0
    %828 = vmatprep.subr.bf16.mxu0 0
    %829 = vmatpush2.bf16.msra.mxu0 0
    %830 = vmatprep.subr.bf16.mxu0 0
    %831 = vmatpush2.bf16.msra.mxu0 0
    %832 = vmatprep.subr.bf16.mxu0 0
    %833 = vmatpush2.bf16.msra.mxu0 0
    %834 = vmatprep.subr.bf16.mxu0 0
    %835 = vmatpush2.bf16.msra.mxu0 0
    %836 = vmatprep.mubr.bf16.mxu0 0
    %837 = vmatmul.mubr.bf16.gmra.mxu0 %v419
    %v838 = vpop.f32.mrf.mxu0
    %v839 = vadd.f32 0.0, %v838
    %v840 = vpop.f32.mrf.mxu0
    %v841 = vpop.f32.mrf.mxu0
    %v842 = vpop.f32.mrf.mxu0
    %843 = vdwg.mxu0
    %v844 = vpack.c.bf16 %v839, %v839
    %v846 = vsel %vm182, %v844, 0
    %848 = vmatprep.subr.bf16.mxu0 0
    %849 = vmatpush1.bf16.msra.mxu0 0
    %850 = vmatprep.subr.bf16.mxu0 0
    %851 = vmatpush1.bf16.msra.mxu0 0
    %852 = vmatprep.subr.bf16.mxu0 0
    %853 = vmatpush1.bf16.msra.mxu0 0
    %854 = vmatprep.subr.bf16.mxu0 0
    %855 = vmatpush1.bf16.msra.mxu0 0
    %856 = vmatprep.subr.bf16.mxu0 0
    %857 = vmatpush1.bf16.msra.mxu0 %v490
    %858 = vmatprep.subr.bf16.mxu0 0
    %859 = vmatpush1.bf16.msra.mxu0 %v489
    %860 = vmatprep.subr.bf16.mxu0 0
    %861 = vmatpush1.bf16.msra.mxu0 %v488
    %862 = vmatprep.subr.bf16.mxu0 0
    %863 = vmatpush1.bf16.msra.mxu0 %v487
    %864 = vmatprep.subr.bf16.mxu0 0
    %865 = vmatpush2.bf16.msra.mxu0 0
    %866 = vmatprep.subr.bf16.mxu0 0
    %867 = vmatpush2.bf16.msra.mxu0 0
    %868 = vmatprep.subr.bf16.mxu0 0
    %869 = vmatpush2.bf16.msra.mxu0 0
    %870 = vmatprep.subr.bf16.mxu0 0
    %871 = vmatpush2.bf16.msra.mxu0 0
    %872 = vmatprep.subr.bf16.mxu0 0
    %873 = vmatpush2.bf16.msra.mxu0 0
    %874 = vmatprep.subr.bf16.mxu0 0
    %875 = vmatpush2.bf16.msra.mxu0 0
    %876 = vmatprep.subr.bf16.mxu0 0
    %877 = vmatpush2.bf16.msra.mxu0 0
    %878 = vmatprep.subr.bf16.mxu0 0
    %879 = vmatpush2.bf16.msra.mxu0 0
    %880 = vmatprep.mubr.bf16.mxu0 0
    %881 = vmatmul.mubr.bf16.gmra.mxu0 %v846
    %v882 = vpop.f32.mrf.mxu0
    %v883 = vadd.f32 0.0, %v882
    %v884 = vpop.f32.mrf.mxu0
    %v885 = vpop.f32.mrf.mxu0
    %v886 = vpop.f32.mrf.mxu0
    %887 = vdwg.mxu0
    %v888 = vadd.f32 %v803, %v883
    %vm889 = vcmp.gt.f32.partialorder %v888, 0.0
    %v890 = vmul.f32 %v888, 0.2
    %v891 = vsel %vm889, %v888, %v890
    %v892 = vpack.c.bf16 %v541, %v541
    %v893 = vld [vmem:[%s3] sm:$0x3]
    %vm894 = vcmask 64512
    %v896 = vsel %vm894, %v893, 0
    %vm898 = vcmask 1043456
    %v900 = vsel %vm898, %v892, 0
    %902 = vmatprep.subr.bf16.mxu0 0
    %903 = vmatpush1.bf16.msra.mxu0 0
    %904 = vmatprep.subr.bf16.mxu0 0
    %905 = vmatpush1.bf16.msra.mxu0 0
    %906 = vmatprep.subr.bf16.mxu0 0
    %907 = vmatpush1.bf16.msra.mxu0 0
    %908 = vmatprep.subr.bf16.mxu0 0
    %909 = vmatpush1.bf16.msra.mxu0 0
    %910 = vmatprep.subr.bf16.mxu0 0
    %911 = vmatpush1.bf16.msra.mxu0 0
    %912 = vmatprep.subr.bf16.mxu0 0
    %913 = vmatpush1.bf16.msra.mxu0 0
    %914 = vmatprep.subr.bf16.mxu0 0
    %915 = vmatpush1.bf16.msra.mxu0 0
    %916 = vmatprep.subr.bf16.mxu0 0
    %917 = vmatpush1.bf16.msra.mxu0 %v900
    %918 = vmatprep.subr.bf16.mxu0 0
    %919 = vmatpush2.bf16.msra.mxu0 0
    %920 = vmatprep.subr.bf16.mxu0 0
    %921 = vmatpush2.bf16.msra.mxu0 0
    %922 = vmatprep.subr.bf16.mxu0 0
    %923 = vmatpush2.bf16.msra.mxu0 0
    %924 = vmatprep.subr.bf16.mxu0 0
    %925 = vmatpush2.bf16.msra.mxu0 0
    %926 = vmatprep.subr.bf16.mxu0 0
    %927 = vmatpush2.bf16.msra.mxu0 0
    %928 = vmatprep.subr.bf16.mxu0 0
    %929 = vmatpush2.bf16.msra.mxu0 0
    %930 = vmatprep.subr.bf16.mxu0 0
    %931 = vmatpush2.bf16.msra.mxu0 0
    %932 = vmatprep.subr.bf16.mxu0 0
    %933 = vmatpush2.bf16.msra.mxu0 0
    %934 = vmatprep.mubr.bf16.mxu0 0
    %935 = vmatmul.mubr.bf16.gmra.mxu0 %v896
    %v936 = vpop.f32.mrf.mxu0
    %v937 = vadd.f32 0.0, %v936
    %v938 = vpop.f32.mrf.mxu0
    %v939 = vpop.f32.mrf.mxu0
    %v940 = vpop.f32.mrf.mxu0
    %941 = vdwg.mxu0
    %v942 = vpack.c.bf16 %v937, %v937
    %v943 = vld [vmem:[%s4] sm:$0xf]
    %v944 = vld [vmem:[%s4 + $0x4] sm:$0xf]
    %v945 = vld [vmem:[%s4 + $0x8] sm:$0xf]
    %v946 = vld [vmem:[%s4 + $0xc] sm:$0xf]
    %v947 = vld [vmem:[%s4 + $0x10] sm:$0xf]
    %v948 = vld [vmem:[%s4 + $0x14] sm:$0xf]
    %v949 = vld [vmem:[%s4 + $0x18] sm:$0xf]
    %v950 = vld [vmem:[%s4 + $0x1c] sm:$0xf]
    %s951 = scalar_lea.vmem %s3, 2
    %v952 = vld [vmem:[%s951] sm:$0x3]
    %v954 = vsel %vm894, %v952, 0
    %956 = vmatprep.subr.bf16.mxu0 0
    %957 = vmatpush1.bf16.msra.mxu0 0
    %958 = vmatprep.subr.bf16.mxu0 0
    %959 = vmatpush1.bf16.msra.mxu0 0
    %960 = vmatprep.subr.bf16.mxu0 0
    %961 = vmatpush1.bf16.msra.mxu0 0
    %962 = vmatprep.subr.bf16.mxu0 0
    %963 = vmatpush1.bf16.msra.mxu0 0
    %964 = vmatprep.subr.bf16.mxu0 0
    %965 = vmatpush1.bf16.msra.mxu0 0
    %966 = vmatprep.subr.bf16.mxu0 0
    %967 = vmatpush1.bf16.msra.mxu0 0
    %968 = vmatprep.subr.bf16.mxu0 0
    %969 = vmatpush1.bf16.msra.mxu0 0
    %970 = vmatprep.subr.bf16.mxu0 0
    %971 = vmatpush1.bf16.msra.mxu0 %v900
    %972 = vmatprep.subr.bf16.mxu0 0
    %973 = vmatpush2.bf16.msra.mxu0 0
    %974 = vmatprep.subr.bf16.mxu0 0
    %975 = vmatpush2.bf16.msra.mxu0 0
    %976 = vmatprep.subr.bf16.mxu0 0
    %977 = vmatpush2.bf16.msra.mxu0 0
    %978 = vmatprep.subr.bf16.mxu0 0
    %979 = vmatpush2.bf16.msra.mxu0 0
    %980 = vmatprep.subr.bf16.mxu0 0
    %981 = vmatpush2.bf16.msra.mxu0 0
    %982 = vmatprep.subr.bf16.mxu0 0
    %983 = vmatpush2.bf16.msra.mxu0 0
    %984 = vmatprep.subr.bf16.mxu0 0
    %985 = vmatpush2.bf16.msra.mxu0 0
    %986 = vmatprep.subr.bf16.mxu0 0
    %987 = vmatpush2.bf16.msra.mxu0 0
    %988 = vmatprep.mubr.bf16.mxu0 0
    %989 = vmatmul.mubr.bf16.gmra.mxu0 %v954
    %v990 = vpop.f32.mrf.mxu0
    %v991 = vadd.f32 0.0, %v990
    %v992 = vpop.f32.mrf.mxu0
    %v993 = vpop.f32.mrf.mxu0
    %v994 = vpop.f32.mrf.mxu0
    %995 = vdwg.mxu0
    %v996 = vpack.c.bf16 %v991, %v991
    %s997 = scalar_lea.vmem %s4, 32
    %v998 = vld [vmem:[%s997] sm:$0xf]
    %v999 = vld [vmem:[%s997 + $0x4] sm:$0xf]
    %v1000 = vld [vmem:[%s997 + $0x8] sm:$0xf]
    %v1001 = vld [vmem:[%s997 + $0xc] sm:$0xf]
    %v1002 = vld [vmem:[%s997 + $0x10] sm:$0xf]
    %v1003 = vld [vmem:[%s997 + $0x14] sm:$0xf]
    %v1004 = vld [vmem:[%s997 + $0x18] sm:$0xf]
    %v1005 = vld [vmem:[%s997 + $0x1c] sm:$0xf]
    %v1014 = vunpack.c.l.b16 %v998
    %v1015 = vunpack.c.l.b16 %v999
    %v1016 = vunpack.c.l.b16 %v1000
    %v1017 = vunpack.c.l.b16 %v1001
    %v1018 = vunpack.c.l.b16 %v1002
    %v1019 = vunpack.c.l.b16 %v1003
    %v1020 = vunpack.c.l.b16 %v1004
    %v1021 = vunpack.c.l.b16 %v1005
    %v1022 = vpack.c.b16 %v1015, %v1014
    %v1023 = vpack.c.b16 %v1017, %v1016
    %v1024 = vpack.c.b16 %v1019, %v1018
    %v1025 = vpack.c.b16 %v1021, %v1020
    %v1031 = vsel %vm182, %v996, 0
    %1033 = vmatprep.subr.bf16.mxu0 0
    %1034 = vmatpush1.bf16.msra.mxu0 0
    %1035 = vmatprep.subr.bf16.mxu0 0
    %1036 = vmatpush1.bf16.msra.mxu0 0
    %1037 = vmatprep.subr.bf16.mxu0 0
    %1038 = vmatpush1.bf16.msra.mxu0 0
    %1039 = vmatprep.subr.bf16.mxu0 0
    %1040 = vmatpush1.bf16.msra.mxu0 0
    %1041 = vmatprep.subr.bf16.mxu0 0
    %1042 = vmatpush1.bf16.msra.mxu0 %v1025
    %1043 = vmatprep.subr.bf16.mxu0 0
    %1044 = vmatpush1.bf16.msra.mxu0 %v1024
    %1045 = vmatprep.subr.bf16.mxu0 0
    %1046 = vmatpush1.bf16.msra.mxu0 %v1023
    %1047 = vmatprep.subr.bf16.mxu0 0
    %1048 = vmatpush1.bf16.msra.mxu0 %v1022
    %1049 = vmatprep.subr.bf16.mxu0 0
    %1050 = vmatpush2.bf16.msra.mxu0 0
    %1051 = vmatprep.subr.bf16.mxu0 0
    %1052 = vmatpush2.bf16.msra.mxu0 0
    %1053 = vmatprep.subr.bf16.mxu0 0
    %1054 = vmatpush2.bf16.msra.mxu0 0
    %1055 = vmatprep.subr.bf16.mxu0 0
    %1056 = vmatpush2.bf16.msra.mxu0 0
    %1057 = vmatprep.subr.bf16.mxu0 0
    %1058 = vmatpush2.bf16.msra.mxu0 0
    %1059 = vmatprep.subr.bf16.mxu0 0
    %1060 = vmatpush2.bf16.msra.mxu0 0
    %1061 = vmatprep.subr.bf16.mxu0 0
    %1062 = vmatpush2.bf16.msra.mxu0 0
    %1063 = vmatprep.subr.bf16.mxu0 0
    %1064 = vmatpush2.bf16.msra.mxu0 0
    %1065 = vmatprep.mubr.bf16.mxu0 0
    %1066 = vmatmul.mubr.bf16.gmra.mxu0 %v1031
    %v1067 = vpop.f32.mrf.mxu0
    %v1068 = vadd.f32 0.0, %v1067
    %v1069 = vpop.f32.mrf.mxu0
    %v1070 = vpop.f32.mrf.mxu0
    %v1071 = vpop.f32.mrf.mxu0
    %1072 = vdwg.mxu0
    %v1081 = vunpack.c.l.b16 %v943
    %v1082 = vunpack.c.l.b16 %v944
    %v1083 = vunpack.c.l.b16 %v945
    %v1084 = vunpack.c.l.b16 %v946
    %v1085 = vunpack.c.l.b16 %v947
    %v1086 = vunpack.c.l.b16 %v948
    %v1087 = vunpack.c.l.b16 %v949
    %v1088 = vunpack.c.l.b16 %v950
    %v1089 = vpack.c.b16 %v1082, %v1081
    %v1090 = vpack.c.b16 %v1084, %v1083
    %v1091 = vpack.c.b16 %v1086, %v1085
    %v1092 = vpack.c.b16 %v1088, %v1087
    %v1098 = vsel %vm182, %v942, 0
    %1100 = vmatprep.subr.bf16.mxu0 0
    %1101 = vmatpush1.bf16.msra.mxu0 0
    %1102 = vmatprep.subr.bf16.mxu0 0
    %1103 = vmatpush1.bf16.msra.mxu0 0
    %1104 = vmatprep.subr.bf16.mxu0 0
    %1105 = vmatpush1.bf16.msra.mxu0 0
    %1106 = vmatprep.subr.bf16.mxu0 0
    %1107 = vmatpush1.bf16.msra.mxu0 0
    %1108 = vmatprep.subr.bf16.mxu0 0
    %1109 = vmatpush1.bf16.msra.mxu0 %v1092
    %1110 = vmatprep.subr.bf16.mxu0 0
    %1111 = vmatpush1.bf16.msra.mxu0 %v1091
    %1112 = vmatprep.subr.bf16.mxu0 0
    %1113 = vmatpush1.bf16.msra.mxu0 %v1090
    %1114 = vmatprep.subr.bf16.mxu0 0
    %1115 = vmatpush1.bf16.msra.mxu0 %v1089
    %1116 = vmatprep.subr.bf16.mxu0 0
    %1117 = vmatpush2.bf16.msra.mxu0 0
    %1118 = vmatprep.subr.bf16.mxu0 0
    %1119 = vmatpush2.bf16.msra.mxu0 0
    %1120 = vmatprep.subr.bf16.mxu0 0
    %1121 = vmatpush2.bf16.msra.mxu0 0
    %1122 = vmatprep.subr.bf16.mxu0 0
    %1123 = vmatpush2.bf16.msra.mxu0 0
    %1124 = vmatprep.subr.bf16.mxu0 0
    %1125 = vmatpush2.bf16.msra.mxu0 0
    %1126 = vmatprep.subr.bf16.mxu0 0
    %1127 = vmatpush2.bf16.msra.mxu0 0
    %1128 = vmatprep.subr.bf16.mxu0 0
    %1129 = vmatpush2.bf16.msra.mxu0 0
    %1130 = vmatprep.subr.bf16.mxu0 0
    %1131 = vmatpush2.bf16.msra.mxu0 0
    %1132 = vmatprep.mubr.bf16.mxu0 0
    %1133 = vmatmul.mubr.bf16.gmra.mxu0 %v1098
    %v1134 = vpop.f32.mrf.mxu0
    %v1135 = vadd.f32 %v1068, %v1134
    %v1136 = vpop.f32.mrf.mxu0
    %v1137 = vpop.f32.mrf.mxu0
    %v1138 = vpop.f32.mrf.mxu0
    %1139 = vdwg.mxu0
    %s1140 = scalar_lea.vmem %s3, 4
    %v1141 = vld [vmem:[%s1140] sm:$0x3]
    %v1143 = vsel %vm894, %v1141, 0
    %1145 = vmatprep.subr.bf16.mxu0 0
    %1146 = vmatpush1.bf16.msra.mxu0 0
    %1147 = vmatprep.subr.bf16.mxu0 0
    %1148 = vmatpush1.bf16.msra.mxu0 0
    %1149 = vmatprep.subr.bf16.mxu0 0
    %1150 = vmatpush1.bf16.msra.mxu0 0
    %1151 = vmatprep.subr.bf16.mxu0 0
    %1152 = vmatpush1.bf16.msra.mxu0 0
    %1153 = vmatprep.subr.bf16.mxu0 0
    %1154 = vmatpush1.bf16.msra.mxu0 0
    %1155 = vmatprep.subr.bf16.mxu0 0
    %1156 = vmatpush1.bf16.msra.mxu0 0
    %1157 = vmatprep.subr.bf16.mxu0 0
    %1158 = vmatpush1.bf16.msra.mxu0 0
    %1159 = vmatprep.subr.bf16.mxu0 0
    %1160 = vmatpush1.bf16.msra.mxu0 %v900
    %1161 = vmatprep.subr.bf16.mxu0 0
    %1162 = vmatpush2.bf16.msra.mxu0 0
    %1163 = vmatprep.subr.bf16.mxu0 0
    %1164 = vmatpush2.bf16.msra.mxu0 0
    %1165 = vmatprep.subr.bf16.mxu0 0
    %1166 = vmatpush2.bf16.msra.mxu0 0
    %1167 = vmatprep.subr.bf16.mxu0 0
    %1168 = vmatpush2.bf16.msra.mxu0 0
    %1169 = vmatprep.subr.bf16.mxu0 0
    %1170 = vmatpush2.bf16.msra.mxu0 0
    %1171 = vmatprep.subr.bf16.mxu0 0
    %1172 = vmatpush2.bf16.msra.mxu0 0
    %1173 = vmatprep.subr.bf16.mxu0 0
    %1174 = vmatpush2.bf16.msra.mxu0 0
    %1175 = vmatprep.subr.bf16.mxu0 0
    %1176 = vmatpush2.bf16.msra.mxu0 0
    %1177 = vmatprep.mubr.bf16.mxu0 0
    %1178 = vmatmul.mubr.bf16.gmra.mxu0 %v1143
    %v1179 = vpop.f32.mrf.mxu0
    %v1180 = vadd.f32 0.0, %v1179
    %v1181 = vpop.f32.mrf.mxu0
    %v1182 = vpop.f32.mrf.mxu0
    %v1183 = vpop.f32.mrf.mxu0
    %1184 = vdwg.mxu0
    %v1185 = vpack.c.bf16 %v1180, %v1180
    %s1186 = scalar_lea.vmem %s4, 64
    %v1187 = vld [vmem:[%s1186] sm:$0xf]
    %v1188 = vld [vmem:[%s1186 + $0x4] sm:$0xf]
    %v1189 = vld [vmem:[%s1186 + $0x8] sm:$0xf]
    %v1190 = vld [vmem:[%s1186 + $0xc] sm:$0xf]
    %v1191 = vld [vmem:[%s1186 + $0x10] sm:$0xf]
    %v1192 = vld [vmem:[%s1186 + $0x14] sm:$0xf]
    %v1193 = vld [vmem:[%s1186 + $0x18] sm:$0xf]
    %v1194 = vld [vmem:[%s1186 + $0x1c] sm:$0xf]
    %v1203 = vunpack.c.l.b16 %v1187
    %v1204 = vunpack.c.l.b16 %v1188
    %v1205 = vunpack.c.l.b16 %v1189
    %v1206 = vunpack.c.l.b16 %v1190
    %v1207 = vunpack.c.l.b16 %v1191
    %v1208 = vunpack.c.l.b16 %v1192
    %v1209 = vunpack.c.l.b16 %v1193
    %v1210 = vunpack.c.l.b16 %v1194
    %v1211 = vpack.c.b16 %v1204, %v1203
    %v1212 = vpack.c.b16 %v1206, %v1205
    %v1213 = vpack.c.b16 %v1208, %v1207
    %v1214 = vpack.c.b16 %v1210, %v1209
    %v1220 = vsel %vm182, %v1185, 0
    %1222 = vmatprep.subr.bf16.mxu0 0
    %1223 = vmatpush1.bf16.msra.mxu0 0
    %1224 = vmatprep.subr.bf16.mxu0 0
    %1225 = vmatpush1.bf16.msra.mxu0 0
    %1226 = vmatprep.subr.bf16.mxu0 0
    %1227 = vmatpush1.bf16.msra.mxu0 0
    %1228 = vmatprep.subr.bf16.mxu0 0
    %1229 = vmatpush1.bf16.msra.mxu0 0
    %1230 = vmatprep.subr.bf16.mxu0 0
    %1231 = vmatpush1.bf16.msra.mxu0 %v1214
    %1232 = vmatprep.subr.bf16.mxu0 0
    %1233 = vmatpush1.bf16.msra.mxu0 %v1213
    %1234 = vmatprep.subr.bf16.mxu0 0
    %1235 = vmatpush1.bf16.msra.mxu0 %v1212
    %1236 = vmatprep.subr.bf16.mxu0 0
    %1237 = vmatpush1.bf16.msra.mxu0 %v1211
    %1238 = vmatprep.subr.bf16.mxu0 0
    %1239 = vmatpush2.bf16.msra.mxu0 0
    %1240 = vmatprep.subr.bf16.mxu0 0
    %1241 = vmatpush2.bf16.msra.mxu0 0
    %1242 = vmatprep.subr.bf16.mxu0 0
    %1243 = vmatpush2.bf16.msra.mxu0 0
    %1244 = vmatprep.subr.bf16.mxu0 0
    %1245 = vmatpush2.bf16.msra.mxu0 0
    %1246 = vmatprep.subr.bf16.mxu0 0
    %1247 = vmatpush2.bf16.msra.mxu0 0
    %1248 = vmatprep.subr.bf16.mxu0 0
    %1249 = vmatpush2.bf16.msra.mxu0 0
    %1250 = vmatprep.subr.bf16.mxu0 0
    %1251 = vmatpush2.bf16.msra.mxu0 0
    %1252 = vmatprep.subr.bf16.mxu0 0
    %1253 = vmatpush2.bf16.msra.mxu0 0
    %1254 = vmatprep.mubr.bf16.mxu0 0
    %1255 = vmatmul.mubr.bf16.gmra.mxu0 %v1220
    %v1256 = vpop.f32.mrf.mxu0
    %v1257 = vadd.f32 0.0, %v1256
    %v1258 = vpop.f32.mrf.mxu0
    %v1259 = vpop.f32.mrf.mxu0
    %v1260 = vpop.f32.mrf.mxu0
    %1261 = vdwg.mxu0
    %v1262 = vadd.f32 %v1135, %v1257
    %s1263 = scalar_lea.vmem %s3, 6
    %v1264 = vld [vmem:[%s1263] sm:$0x3]
    %v1266 = vsel %vm894, %v1264, 0
    %1268 = vmatprep.subr.bf16.mxu0 0
    %1269 = vmatpush1.bf16.msra.mxu0 0
    %1270 = vmatprep.subr.bf16.mxu0 0
    %1271 = vmatpush1.bf16.msra.mxu0 0
    %1272 = vmatprep.subr.bf16.mxu0 0
    %1273 = vmatpush1.bf16.msra.mxu0 0
    %1274 = vmatprep.subr.bf16.mxu0 0
    %1275 = vmatpush1.bf16.msra.mxu0 0
    %1276 = vmatprep.subr.bf16.mxu0 0
    %1277 = vmatpush1.bf16.msra.mxu0 0
    %1278 = vmatprep.subr.bf16.mxu0 0
    %1279 = vmatpush1.bf16.msra.mxu0 0
    %1280 = vmatprep.subr.bf16.mxu0 0
    %1281 = vmatpush1.bf16.msra.mxu0 0
    %1282 = vmatprep.subr.bf16.mxu0 0
    %1283 = vmatpush1.bf16.msra.mxu0 %v900
    %1284 = vmatprep.subr.bf16.mxu0 0
    %1285 = vmatpush2.bf16.msra.mxu0 0
    %1286 = vmatprep.subr.bf16.mxu0 0
    %1287 = vmatpush2.bf16.msra.mxu0 0
    %1288 = vmatprep.subr.bf16.mxu0 0
    %1289 = vmatpush2.bf16.msra.mxu0 0
    %1290 = vmatprep.subr.bf16.mxu0 0
    %1291 = vmatpush2.bf16.msra.mxu0 0
    %1292 = vmatprep.subr.bf16.mxu0 0
    %1293 = vmatpush2.bf16.msra.mxu0 0
    %1294 = vmatprep.subr.bf16.mxu0 0
    %1295 = vmatpush2.bf16.msra.mxu0 0
    %1296 = vmatprep.subr.bf16.mxu0 0
    %1297 = vmatpush2.bf16.msra.mxu0 0
    %1298 = vmatprep.subr.bf16.mxu0 0
    %1299 = vmatpush2.bf16.msra.mxu0 0
    %1300 = vmatprep.mubr.bf16.mxu0 0
    %1301 = vmatmul.mubr.bf16.gmra.mxu0 %v1266
    %v1302 = vpop.f32.mrf.mxu0
    %v1303 = vadd.f32 0.0, %v1302
    %v1304 = vpop.f32.mrf.mxu0
    %v1305 = vpop.f32.mrf.mxu0
    %v1306 = vpop.f32.mrf.mxu0
    %1307 = vdwg.mxu0
    %v1308 = vpack.c.bf16 %v1303, %v1303
    %s1309 = scalar_lea.vmem %s4, 96
    %v1310 = vld [vmem:[%s1309] sm:$0xf]
    %v1311 = vld [vmem:[%s1309 + $0x4] sm:$0xf]
    %v1312 = vld [vmem:[%s1309 + $0x8] sm:$0xf]
    %v1313 = vld [vmem:[%s1309 + $0xc] sm:$0xf]
    %v1314 = vld [vmem:[%s1309 + $0x10] sm:$0xf]
    %v1315 = vld [vmem:[%s1309 + $0x14] sm:$0xf]
    %v1316 = vld [vmem:[%s1309 + $0x18] sm:$0xf]
    %v1317 = vld [vmem:[%s1309 + $0x1c] sm:$0xf]
    %v1326 = vunpack.c.l.b16 %v1310
    %v1327 = vunpack.c.l.b16 %v1311
    %v1328 = vunpack.c.l.b16 %v1312
    %v1329 = vunpack.c.l.b16 %v1313
    %v1330 = vunpack.c.l.b16 %v1314
    %v1331 = vunpack.c.l.b16 %v1315
    %v1332 = vunpack.c.l.b16 %v1316
    %v1333 = vunpack.c.l.b16 %v1317
    %v1334 = vpack.c.b16 %v1327, %v1326
    %v1335 = vpack.c.b16 %v1329, %v1328
    %v1336 = vpack.c.b16 %v1331, %v1330
    %v1337 = vpack.c.b16 %v1333, %v1332
    %v1343 = vsel %vm182, %v1308, 0
    %1345 = vmatprep.subr.bf16.mxu0 0
    %1346 = vmatpush1.bf16.msra.mxu0 0
    %1347 = vmatprep.subr.bf16.mxu0 0
    %1348 = vmatpush1.bf16.msra.mxu0 0
    %1349 = vmatprep.subr.bf16.mxu0 0
    %1350 = vmatpush1.bf16.msra.mxu0 0
    %1351 = vmatprep.subr.bf16.mxu0 0
    %1352 = vmatpush1.bf16.msra.mxu0 0
    %1353 = vmatprep.subr.bf16.mxu0 0
    %1354 = vmatpush1.bf16.msra.mxu0 %v1337
    %1355 = vmatprep.subr.bf16.mxu0 0
    %1356 = vmatpush1.bf16.msra.mxu0 %v1336
    %1357 = vmatprep.subr.bf16.mxu0 0
    %1358 = vmatpush1.bf16.msra.mxu0 %v1335
    %1359 = vmatprep.subr.bf16.mxu0 0
    %1360 = vmatpush1.bf16.msra.mxu0 %v1334
    %1361 = vmatprep.subr.bf16.mxu0 0
    %1362 = vmatpush2.bf16.msra.mxu0 0
    %1363 = vmatprep.subr.bf16.mxu0 0
    %1364 = vmatpush2.bf16.msra.mxu0 0
    %1365 = vmatprep.subr.bf16.mxu0 0
    %1366 = vmatpush2.bf16.msra.mxu0 0
    %1367 = vmatprep.subr.bf16.mxu0 0
    %1368 = vmatpush2.bf16.msra.mxu0 0
    %1369 = vmatprep.subr.bf16.mxu0 0
    %1370 = vmatpush2.bf16.msra.mxu0 0
    %1371 = vmatprep.subr.bf16.mxu0 0
    %1372 = vmatpush2.bf16.msra.mxu0 0
    %1373 = vmatprep.subr.bf16.mxu0 0
    %1374 = vmatpush2.bf16.msra.mxu0 0
    %1375 = vmatprep.subr.bf16.mxu0 0
    %1376 = vmatpush2.bf16.msra.mxu0 0
    %1377 = vmatprep.mubr.bf16.mxu0 0
    %1378 = vmatmul.mubr.bf16.gmra.mxu0 %v1343
    %v1379 = vpop.f32.mrf.mxu0
    %v1380 = vadd.f32 0.0, %v1379
    %v1381 = vpop.f32.mrf.mxu0
    %v1382 = vpop.f32.mrf.mxu0
    %v1383 = vpop.f32.mrf.mxu0
    %1384 = vdwg.mxu0
    %v1385 = vadd.f32 %v1262, %v1380
    %v1386 = vpack.c.bf16 %v891, %v891
    %v1388 = vsel %vm898, %v1386, 0
    %1390 = vmatprep.subr.bf16.mxu0 0
    %1391 = vmatpush1.bf16.msra.mxu0 0
    %1392 = vmatprep.subr.bf16.mxu0 0
    %1393 = vmatpush1.bf16.msra.mxu0 0
    %1394 = vmatprep.subr.bf16.mxu0 0
    %1395 = vmatpush1.bf16.msra.mxu0 0
    %1396 = vmatprep.subr.bf16.mxu0 0
    %1397 = vmatpush1.bf16.msra.mxu0 0
    %1398 = vmatprep.subr.bf16.mxu0 0
    %1399 = vmatpush1.bf16.msra.mxu0 0
    %1400 = vmatprep.subr.bf16.mxu0 0
    %1401 = vmatpush1.bf16.msra.mxu0 0
    %1402 = vmatprep.subr.bf16.mxu0 0
    %1403 = vmatpush1.bf16.msra.mxu0 0
    %1404 = vmatprep.subr.bf16.mxu0 0
    %1405 = vmatpush1.bf16.msra.mxu0 %v1388
    %1406 = vmatprep.subr.bf16.mxu0 0
    %1407 = vmatpush2.bf16.msra.mxu0 0
    %1408 = vmatprep.subr.bf16.mxu0 0
    %1409 = vmatpush2.bf16.msra.mxu0 0
    %1410 = vmatprep.subr.bf16.mxu0 0
    %1411 = vmatpush2.bf16.msra.mxu0 0
    %1412 = vmatprep.subr.bf16.mxu0 0
    %1413 = vmatpush2.bf16.msra.mxu0 0
    %1414 = vmatprep.subr.bf16.mxu0 0
    %1415 = vmatpush2.bf16.msra.mxu0 0
    %1416 = vmatprep.subr.bf16.mxu0 0
    %1417 = vmatpush2.bf16.msra.mxu0 0
    %1418 = vmatprep.subr.bf16.mxu0 0
    %1419 = vmatpush2.bf16.msra.mxu0 0
    %1420 = vmatprep.subr.bf16.mxu0 0
    %1421 = vmatpush2.bf16.msra.mxu0 0
    %1422 = vmatprep.mubr.bf16.mxu0 0
    %1423 = vmatmul.mubr.bf16.gmra.mxu0 %v896
    %v1424 = vpop.f32.mrf.mxu0
    %v1425 = vadd.f32 0.0, %v1424
    %v1426 = vpop.f32.mrf.mxu0
    %v1427 = vpop.f32.mrf.mxu0
    %v1428 = vpop.f32.mrf.mxu0
    %1429 = vdwg.mxu0
    %v1430 = vpack.c.bf16 %v1425, %v1425
    %1431 = vmatprep.subr.bf16.mxu0 0
    %1432 = vmatpush1.bf16.msra.mxu0 0
    %1433 = vmatprep.subr.bf16.mxu0 0
    %1434 = vmatpush1.bf16.msra.mxu0 0
    %1435 = vmatprep.subr.bf16.mxu0 0
    %1436 = vmatpush1.bf16.msra.mxu0 0
    %1437 = vmatprep.subr.bf16.mxu0 0
    %1438 = vmatpush1.bf16.msra.mxu0 0
    %1439 = vmatprep.subr.bf16.mxu0 0
    %1440 = vmatpush1.bf16.msra.mxu0 0
    %1441 = vmatprep.subr.bf16.mxu0 0
    %1442 = vmatpush1.bf16.msra.mxu0 0
    %1443 = vmatprep.subr.bf16.mxu0 0
    %1444 = vmatpush1.bf16.msra.mxu0 0
    %1445 = vmatprep.subr.bf16.mxu0 0
    %1446 = vmatpush1.bf16.msra.mxu0 %v1388
    %1447 = vmatprep.subr.bf16.mxu0 0
    %1448 = vmatpush2.bf16.msra.mxu0 0
    %1449 = vmatprep.subr.bf16.mxu0 0
    %1450 = vmatpush2.bf16.msra.mxu0 0
    %1451 = vmatprep.subr.bf16.mxu0 0
    %1452 = vmatpush2.bf16.msra.mxu0 0
    %1453 = vmatprep.subr.bf16.mxu0 0
    %1454 = vmatpush2.bf16.msra.mxu0 0
    %1455 = vmatprep.subr.bf16.mxu0 0
    %1456 = vmatpush2.bf16.msra.mxu0 0
    %1457 = vmatprep.subr.bf16.mxu0 0
    %1458 = vmatpush2.bf16.msra.mxu0 0
    %1459 = vmatprep.subr.bf16.mxu0 0
    %1460 = vmatpush2.bf16.msra.mxu0 0
    %1461 = vmatprep.subr.bf16.mxu0 0
    %1462 = vmatpush2.bf16.msra.mxu0 0
    %1463 = vmatprep.mubr.bf16.mxu0 0
    %1464 = vmatmul.mubr.bf16.gmra.mxu0 %v954
    %v1465 = vpop.f32.mrf.mxu0
    %v1466 = vadd.f32 0.0, %v1465
    %v1467 = vpop.f32.mrf.mxu0
    %v1468 = vpop.f32.mrf.mxu0
    %v1469 = vpop.f32.mrf.mxu0
    %1470 = vdwg.mxu0
    %v1471 = vpack.c.bf16 %v1466, %v1466
    %v1473 = vsel %vm182, %v1471, 0
    %1475 = vmatprep.subr.bf16.mxu0 0
    %1476 = vmatpush1.bf16.msra.mxu0 0
    %1477 = vmatprep.subr.bf16.mxu0 0
    %1478 = vmatpush1.bf16.msra.mxu0 0
    %1479 = vmatprep.subr.bf16.mxu0 0
    %1480 = vmatpush1.bf16.msra.mxu0 0
    %1481 = vmatprep.subr.bf16.mxu0 0
    %1482 = vmatpush1.bf16.msra.mxu0 0
    %1483 = vmatprep.subr.bf16.mxu0 0
    %1484 = vmatpush1.bf16.msra.mxu0 %v1025
    %1485 = vmatprep.subr.bf16.mxu0 0
    %1486 = vmatpush1.bf16.msra.mxu0 %v1024
    %1487 = vmatprep.subr.bf16.mxu0 0
    %1488 = vmatpush1.bf16.msra.mxu0 %v1023
    %1489 = vmatprep.subr.bf16.mxu0 0
    %1490 = vmatpush1.bf16.msra.mxu0 %v1022
    %1491 = vmatprep.subr.bf16.mxu0 0
    %1492 = vmatpush2.bf16.msra.mxu0 0
    %1493 = vmatprep.subr.bf16.mxu0 0
    %1494 = vmatpush2.bf16.msra.mxu0 0
    %1495 = vmatprep.subr.bf16.mxu0 0
    %1496 = vmatpush2.bf16.msra.mxu0 0
    %1497 = vmatprep.subr.bf16.mxu0 0
    %1498 = vmatpush2.bf16.msra.mxu0 0
    %1499 = vmatprep.subr.bf16.mxu0 0
    %1500 = vmatpush2.bf16.msra.mxu0 0
    %1501 = vmatprep.subr.bf16.mxu0 0
    %1502 = vmatpush2.bf16.msra.mxu0 0
    %1503 = vmatprep.subr.bf16.mxu0 0
    %1504 = vmatpush2.bf16.msra.mxu0 0
    %1505 = vmatprep.subr.bf16.mxu0 0
    %1506 = vmatpush2.bf16.msra.mxu0 0
    %1507 = vmatprep.mubr.bf16.mxu0 0
    %1508 = vmatmul.mubr.bf16.gmra.mxu0 %v1473
    %v1509 = vpop.f32.mrf.mxu0
    %v1510 = vadd.f32 0.0, %v1509
    %v1511 = vpop.f32.mrf.mxu0
    %v1512 = vpop.f32.mrf.mxu0
    %v1513 = vpop.f32.mrf.mxu0
    %1514 = vdwg.mxu0
    %v1516 = vsel %vm182, %v1430, 0
    %1518 = vmatprep.subr.bf16.mxu0 0
    %1519 = vmatpush1.bf16.msra.mxu0 0
    %1520 = vmatprep.subr.bf16.mxu0 0
    %1521 = vmatpush1.bf16.msra.mxu0 0
    %1522 = vmatprep.subr.bf16.mxu0 0
    %1523 = vmatpush1.bf16.msra.mxu0 0
    %1524 = vmatprep.subr.bf16.mxu0 0
    %1525 = vmatpush1.bf16.msra.mxu0 0
    %1526 = vmatprep.subr.bf16.mxu0 0
    %1527 = vmatpush1.bf16.msra.mxu0 %v1092
    %1528 = vmatprep.subr.bf16.mxu0 0
    %1529 = vmatpush1.bf16.msra.mxu0 %v1091
    %1530 = vmatprep.subr.bf16.mxu0 0
    %1531 = vmatpush1.bf16.msra.mxu0 %v1090
    %1532 = vmatprep.subr.bf16.mxu0 0
    %1533 = vmatpush1.bf16.msra.mxu0 %v1089
    %1534 = vmatprep.subr.bf16.mxu0 0
    %1535 = vmatpush2.bf16.msra.mxu0 0
    %1536 = vmatprep.subr.bf16.mxu0 0
    %1537 = vmatpush2.bf16.msra.mxu0 0
    %1538 = vmatprep.subr.bf16.mxu0 0
    %1539 = vmatpush2.bf16.msra.mxu0 0
    %1540 = vmatprep.subr.bf16.mxu0 0
    %1541 = vmatpush2.bf16.msra.mxu0 0
    %1542 = vmatprep.subr.bf16.mxu0 0
    %1543 = vmatpush2.bf16.msra.mxu0 0
    %1544 = vmatprep.subr.bf16.mxu0 0
    %1545 = vmatpush2.bf16.msra.mxu0 0
    %1546 = vmatprep.subr.bf16.mxu0 0
    %1547 = vmatpush2.bf16.msra.mxu0 0
    %1548 = vmatprep.subr.bf16.mxu0 0
    %1549 = vmatpush2.bf16.msra.mxu0 0
    %1550 = vmatprep.mubr.bf16.mxu0 0
    %1551 = vmatmul.mubr.bf16.gmra.mxu0 %v1516
    %v1552 = vpop.f32.mrf.mxu0
    %v1553 = vadd.f32 %v1510, %v1552
    %v1554 = vpop.f32.mrf.mxu0
    %v1555 = vpop.f32.mrf.mxu0
    %v1556 = vpop.f32.mrf.mxu0
    %1557 = vdwg.mxu0
    %1558 = vmatprep.subr.bf16.mxu0 0
    %1559 = vmatpush1.bf16.msra.mxu0 0
    %1560 = vmatprep.subr.bf16.mxu0 0
    %1561 = vmatpush1.bf16.msra.mxu0 0
    %1562 = vmatprep.subr.bf16.mxu0 0
    %1563 = vmatpush1.bf16.msra.mxu0 0
    %1564 = vmatprep.subr.bf16.mxu0 0
    %1565 = vmatpush1.bf16.msra.mxu0 0
    %1566 = vmatprep.subr.bf16.mxu0 0
    %1567 = vmatpush1.bf16.msra.mxu0 0
    %1568 = vmatprep.subr.bf16.mxu0 0
    %1569 = vmatpush1.bf16.msra.mxu0 0
    %1570 = vmatprep.subr.bf16.mxu0 0
    %1571 = vmatpush1.bf16.msra.mxu0 0
    %1572 = vmatprep.subr.bf16.mxu0 0
    %1573 = vmatpush1.bf16.msra.mxu0 %v1388
    %1574 = vmatprep.subr.bf16.mxu0 0
    %1575 = vmatpush2.bf16.msra.mxu0 0
    %1576 = vmatprep.subr.bf16.mxu0 0
    %1577 = vmatpush2.bf16.msra.mxu0 0
    %1578 = vmatprep.subr.bf16.mxu0 0
    %1579 = vmatpush2.bf16.msra.mxu0 0
    %1580 = vmatprep.subr.bf16.mxu0 0
    %1581 = vmatpush2.bf16.msra.mxu0 0
    %1582 = vmatprep.subr.bf16.mxu0 0
    %1583 = vmatpush2.bf16.msra.mxu0 0
    %1584 = vmatprep.subr.bf16.mxu0 0
    %1585 = vmatpush2.bf16.msra.mxu0 0
    %1586 = vmatprep.subr.bf16.mxu0 0
    %1587 = vmatpush2.bf16.msra.mxu0 0
    %1588 = vmatprep.subr.bf16.mxu0 0
    %1589 = vmatpush2.bf16.msra.mxu0 0
    %1590 = vmatprep.mubr.bf16.mxu0 0
    %1591 = vmatmul.mubr.bf16.gmra.mxu0 %v1143
    %v1592 = vpop.f32.mrf.mxu0
    %v1593 = vadd.f32 0.0, %v1592
    %v1594 = vpop.f32.mrf.mxu0
    %v1595 = vpop.f32.mrf.mxu0
    %v1596 = vpop.f32.mrf.mxu0
    %1597 = vdwg.mxu0
    %v1598 = vpack.c.bf16 %v1593, %v1593
    %v1600 = vsel %vm182, %v1598, 0
    %1602 = vmatprep.subr.bf16.mxu0 0
    %1603 = vmatpush1.bf16.msra.mxu0 0
    %1604 = vmatprep.subr.bf16.mxu0 0
    %1605 = vmatpush1.bf16.msra.mxu0 0
    %1606 = vmatprep.subr.bf16.mxu0 0
    %1607 = vmatpush1.bf16.msra.mxu0 0
    %1608 = vmatprep.subr.bf16.mxu0 0
    %1609 = vmatpush1.bf16.msra.mxu0 0
    %1610 = vmatprep.subr.bf16.mxu0 0
    %1611 = vmatpush1.bf16.msra.mxu0 %v1214
    %1612 = vmatprep.subr.bf16.mxu0 0
    %1613 = vmatpush1.bf16.msra.mxu0 %v1213
    %1614 = vmatprep.subr.bf16.mxu0 0
    %1615 = vmatpush1.bf16.msra.mxu0 %v1212
    %1616 = vmatprep.subr.bf16.mxu0 0
    %1617 = vmatpush1.bf16.msra.mxu0 %v1211
    %1618 = vmatprep.subr.bf16.mxu0 0
    %1619 = vmatpush2.bf16.msra.mxu0 0
    %1620 = vmatprep.subr.bf16.mxu0 0
    %1621 = vmatpush2.bf16.msra.mxu0 0
    %1622 = vmatprep.subr.bf16.mxu0 0
    %1623 = vmatpush2.bf16.msra.mxu0 0
    %1624 = vmatprep.subr.bf16.mxu0 0
    %1625 = vmatpush2.bf16.msra.mxu0 0
    %1626 = vmatprep.subr.bf16.mxu0 0
    %1627 = vmatpush2.bf16.msra.mxu0 0
    %1628 = vmatprep.subr.bf16.mxu0 0
    %1629 = vmatpush2.bf16.msra.mxu0 0
    %1630 = vmatprep.subr.bf16.mxu0 0
    %1631 = vmatpush2.bf16.msra.mxu0 0
    %1632 = vmatprep.subr.bf16.mxu0 0
    %1633 = vmatpush2.bf16.msra.mxu0 0
    %1634 = vmatprep.mubr.bf16.mxu0 0
    %1635 = vmatmul.mubr.bf16.gmra.mxu0 %v1600
    %v1636 = vpop.f32.mrf.mxu0
    %v1637 = vadd.f32 0.0, %v1636
    %v1638 = vpop.f32.mrf.mxu0
    %v1639 = vpop.f32.mrf.mxu0
    %v1640 = vpop.f32.mrf.mxu0
    %1641 = vdwg.mxu0
    %v1642 = vadd.f32 %v1553, %v1637
    %1643 = vmatprep.subr.bf16.mxu0 0
    %1644 = vmatpush1.bf16.msra.mxu0 0
    %1645 = vmatprep.subr.bf16.mxu0 0
    %1646 = vmatpush1.bf16.msra.mxu0 0
    %1647 = vmatprep.subr.bf16.mxu0 0
    %1648 = vmatpush1.bf16.msra.mxu0 0
    %1649 = vmatprep.subr.bf16.mxu0 0
    %1650 = vmatpush1.bf16.msra.mxu0 0
    %1651 = vmatprep.subr.bf16.mxu0 0
    %1652 = vmatpush1.bf16.msra.mxu0 0
    %1653 = vmatprep.subr.bf16.mxu0 0
    %1654 = vmatpush1.bf16.msra.mxu0 0
    %1655 = vmatprep.subr.bf16.mxu0 0
    %1656 = vmatpush1.bf16.msra.mxu0 0
    %1657 = vmatprep.subr.bf16.mxu0 0
    %1658 = vmatpush1.bf16.msra.mxu0 %v1388
    %1659 = vmatprep.subr.bf16.mxu0 0
    %1660 = vmatpush2.bf16.msra.mxu0 0
    %1661 = vmatprep.subr.bf16.mxu0 0
    %1662 = vmatpush2.bf16.msra.mxu0 0
    %1663 = vmatprep.subr.bf16.mxu0 0
    %1664 = vmatpush2.bf16.msra.mxu0 0
    %1665 = vmatprep.subr.bf16.mxu0 0
    %1666 = vmatpush2.bf16.msra.mxu0 0
    %1667 = vmatprep.subr.bf16.mxu0 0
    %1668 = vmatpush2.bf16.msra.mxu0 0
    %1669 = vmatprep.subr.bf16.mxu0 0
    %1670 = vmatpush2.bf16.msra.mxu0 0
    %1671 = vmatprep.subr.bf16.mxu0 0
    %1672 = vmatpush2.bf16.msra.mxu0 0
    %1673 = vmatprep.subr.bf16.mxu0 0
    %1674 = vmatpush2.bf16.msra.mxu0 0
    %1675 = vmatprep.mubr.bf16.mxu0 0
    %1676 = vmatmul.mubr.bf16.gmra.mxu0 %v1266
    %v1677 = vpop.f32.mrf.mxu0
    %v1678 = vadd.f32 0.0, %v1677
    %v1679 = vpop.f32.mrf.mxu0
    %v1680 = vpop.f32.mrf.mxu0
    %v1681 = vpop.f32.mrf.mxu0
    %1682 = vdwg.mxu0
    %v1683 = vpack.c.bf16 %v1678, %v1678
    %v1685 = vsel %vm182, %v1683, 0
    %1687 = vmatprep.subr.bf16.mxu0 0
    %1688 = vmatpush1.bf16.msra.mxu0 0
    %1689 = vmatprep.subr.bf16.mxu0 0
    %1690 = vmatpush1.bf16.msra.mxu0 0
    %1691 = vmatprep.subr.bf16.mxu0 0
    %1692 = vmatpush1.bf16.msra.mxu0 0
    %1693 = vmatprep.subr.bf16.mxu0 0
    %1694 = vmatpush1.bf16.msra.mxu0 0
    %1695 = vmatprep.subr.bf16.mxu0 0
    %1696 = vmatpush1.bf16.msra.mxu0 %v1337
    %1697 = vmatprep.subr.bf16.mxu0 0
    %1698 = vmatpush1.bf16.msra.mxu0 %v1336
    %1699 = vmatprep.subr.bf16.mxu0 0
    %1700 = vmatpush1.bf16.msra.mxu0 %v1335
    %1701 = vmatprep.subr.bf16.mxu0 0
    %1702 = vmatpush1.bf16.msra.mxu0 %v1334
    %1703 = vmatprep.subr.bf16.mxu0 0
    %1704 = vmatpush2.bf16.msra.mxu0 0
    %1705 = vmatprep.subr.bf16.mxu0 0
    %1706 = vmatpush2.bf16.msra.mxu0 0
    %1707 = vmatprep.subr.bf16.mxu0 0
    %1708 = vmatpush2.bf16.msra.mxu0 0
    %1709 = vmatprep.subr.bf16.mxu0 0
    %1710 = vmatpush2.bf16.msra.mxu0 0
    %1711 = vmatprep.subr.bf16.mxu0 0
    %1712 = vmatpush2.bf16.msra.mxu0 0
    %1713 = vmatprep.subr.bf16.mxu0 0
    %1714 = vmatpush2.bf16.msra.mxu0 0
    %1715 = vmatprep.subr.bf16.mxu0 0
    %1716 = vmatpush2.bf16.msra.mxu0 0
    %1717 = vmatprep.subr.bf16.mxu0 0
    %1718 = vmatpush2.bf16.msra.mxu0 0
    %1719 = vmatprep.mubr.bf16.mxu0 0
    %1720 = vmatmul.mubr.bf16.gmra.mxu0 %v1685
    %v1721 = vpop.f32.mrf.mxu0
    %v1722 = vadd.f32 0.0, %v1721
    %v1723 = vpop.f32.mrf.mxu0
    %v1724 = vpop.f32.mrf.mxu0
    %v1725 = vpop.f32.mrf.mxu0
    %1726 = vdwg.mxu0
    %v1727 = vadd.f32 %v1642, %v1722
    %v1728 = vld [vmem:[%s7] sm:$0xff]
    %v1729 = vld [vmem:[%s7 + $0x8] sm:$0xff]
    %v1730 = vld [vmem:[%s7 + $0x10] sm:$0xff]
    %v1731 = vld [vmem:[%s7 + $0x18] sm:$0xff]
    %v1732 = vld [vmem:[%s7 + $0x20] sm:$0xff]
    %v1733 = vld [vmem:[%s7 + $0x28] sm:$0xff]
    %v1734 = vld [vmem:[%s7 + $0x30] sm:$0xff]
    %v1735 = vld [vmem:[%s7 + $0x38] sm:$0xff]
    %vm1736 = vcmask 519168
    %v1737 = vsel %vm1736, %v1385, 0.0
    %v1738 = vrot.slane %v1737, 4
    %v1739 = vadd.f32 %v1737, %v1738
    %v1740 = vrot.slane %v1739, 2
    %v1741 = vadd.f32 %v1739, %v1740
    %v1742 = vrot.slane %v1741, 1
    %v1743 = vadd.f32 %v1741, %v1742
    %v1744 = vadd.f32 %v1743, 0.0
    %v1745 = vsel %vm1736, %v1727, 0.0
    %v1746 = vrot.slane %v1745, 4
    %v1747 = vadd.f32 %v1745, %v1746
    %v1748 = vrot.slane %v1747, 2
    %v1749 = vadd.f32 %v1747, %v1748
    %v1750 = vrot.slane %v1749, 1
    %v1751 = vadd.f32 %v1749, %v1750
    %v1752 = vadd.f32 %v1744, %v1751
    %v1753 = vmul.f32 %v1385, %v1385
    %v1754 = vsel %vm1736, %v1753, 0.0
    %v1755 = vrot.slane %v1754, 4
    %v1756 = vadd.f32 %v1754, %v1755
    %v1757 = vrot.slane %v1756, 2
    %v1758 = vadd.f32 %v1756, %v1757
    %v1759 = vrot.slane %v1758, 1
    %v1760 = vadd.f32 %v1758, %v1759
    %v1761 = vadd.f32 %v1760, 0.0
    %v1762 = vmul.f32 %v1727, %v1727
    %v1763 = vsel %vm1736, %v1762, 0.0
    %v1764 = vrot.slane %v1763, 4
    %v1765 = vadd.f32 %v1763, %v1764
    %v1766 = vrot.slane %v1765, 2
    %v1767 = vadd.f32 %v1765, %v1766
    %v1768 = vrot.slane %v1767, 1
    %v1769 = vadd.f32 %v1767, %v1768
    %v1770 = vadd.f32 %v1761, %v1769
    %v1772 = vsel %vm182, %v1752, 0
    %1774 = vmatprep.subr.mxu0 0.0
    %1775 = vmatpush1.msra.mxu0 0.0
    %1776 = vmatprep.subr.mxu0 0.0
    %1777 = vmatpush1.msra.mxu0 0.0
    %1778 = vmatprep.subr.mxu0 0.0
    %1779 = vmatpush1.msra.mxu0 0.0
    %1780 = vmatprep.subr.mxu0 0.0
    %1781 = vmatpush1.msra.mxu0 0.0
    %1782 = vmatprep.subr.mxu0 0.0
    %1783 = vmatpush1.msra.mxu0 0.0
    %1784 = vmatprep.subr.mxu0 0.0
    %1785 = vmatpush1.msra.mxu0 0.0
    %1786 = vmatprep.subr.mxu0 0.0
    %1787 = vmatpush1.msra.mxu0 0.0
    %1788 = vmatprep.subr.mxu0 0.0
    %1789 = vmatpush1.msra.mxu0 0.0
    %1790 = vmatprep.subr.mxu0 0.0
    %1791 = vmatpush1.msra.mxu0 %v1735
    %1792 = vmatprep.subr.mxu0 0.0
    %1793 = vmatpush1.msra.mxu0 %v1734
    %1794 = vmatprep.subr.mxu0 0.0
    %1795 = vmatpush1.msra.mxu0 %v1733
    %1796 = vmatprep.subr.mxu0 0.0
    %1797 = vmatpush1.msra.mxu0 %v1732
    %1798 = vmatprep.subr.mxu0 0.0
    %1799 = vmatpush1.msra.mxu0 %v1731
    %1800 = vmatprep.subr.mxu0 0.0
    %1801 = vmatpush1.msra.mxu0 %v1730
    %1802 = vmatprep.subr.mxu0 0.0
    %1803 = vmatpush1.msra.mxu0 %v1729
    %1804 = vmatprep.subr.mxu0 0.0
    %1805 = vmatpush1.msra.mxu0 %v1728
    %1806 = vmatprep.subr.mxu0 0.0
    %1807 = vmatpush2.msra.mxu0 0.0
    %1808 = vmatprep.subr.mxu0 0.0
    %1809 = vmatpush2.msra.mxu0 0.0
    %1810 = vmatprep.subr.mxu0 0.0
    %1811 = vmatpush2.msra.mxu0 0.0
    %1812 = vmatprep.subr.mxu0 0.0
    %1813 = vmatpush2.msra.mxu0 0.0
    %1814 = vmatprep.subr.mxu0 0.0
    %1815 = vmatpush2.msra.mxu0 0.0
    %1816 = vmatprep.subr.mxu0 0.0
    %1817 = vmatpush2.msra.mxu0 0.0
    %1818 = vmatprep.subr.mxu0 0.0
    %1819 = vmatpush2.msra.mxu0 0.0
    %1820 = vmatprep.subr.mxu0 0.0
    %1821 = vmatpush2.msra.mxu0 0.0
    %1822 = vmatprep.subr.mxu0 0.0
    %1823 = vmatpush2.msra.mxu0 0.0
    %1824 = vmatprep.subr.mxu0 0.0
    %1825 = vmatpush2.msra.mxu0 0.0
    %1826 = vmatprep.subr.mxu0 0.0
    %1827 = vmatpush2.msra.mxu0 0.0
    %1828 = vmatprep.subr.mxu0 0.0
    %1829 = vmatpush2.msra.mxu0 0.0
    %1830 = vmatprep.subr.mxu0 0.0
    %1831 = vmatpush2.msra.mxu0 0.0
    %1832 = vmatprep.subr.mxu0 0.0
    %1833 = vmatpush2.msra.mxu0 0.0
    %1834 = vmatprep.subr.mxu0 0.0
    %1835 = vmatpush2.msra.mxu0 0.0
    %1836 = vmatprep.subr.mxu0 0.0
    %1837 = vmatpush2.msra.mxu0 0.0
    %1838 = vmatprep.mubr.f32.mxu0 0.0
    %1839 = vmatmul.mubr.f32.gmra.mxu0 %v1772
    %v1840 = vpop.f32.mrf.mxu0
    %v1841 = vadd.f32 0.0, %v1840
    %v1842 = vpop.f32.mrf.mxu0
    %1843 = vdwg.mxu0
    %v1845 = vsel %vm182, %v1770, 0
    %1847 = vmatprep.subr.mxu0 0.0
    %1848 = vmatpush1.msra.mxu0 0.0
    %1849 = vmatprep.subr.mxu0 0.0
    %1850 = vmatpush1.msra.mxu0 0.0
    %1851 = vmatprep.subr.mxu0 0.0
    %1852 = vmatpush1.msra.mxu0 0.0
    %1853 = vmatprep.subr.mxu0 0.0
    %1854 = vmatpush1.msra.mxu0 0.0
    %1855 = vmatprep.subr.mxu0 0.0
    %1856 = vmatpush1.msra.mxu0 0.0
    %1857 = vmatprep.subr.mxu0 0.0
    %1858 = vmatpush1.msra.mxu0 0.0
    %1859 = vmatprep.subr.mxu0 0.0
    %1860 = vmatpush1.msra.mxu0 0.0
    %1861 = vmatprep.subr.mxu0 0.0
    %1862 = vmatpush1.msra.mxu0 0.0
    %1863 = vmatprep.subr.mxu0 0.0
    %1864 = vmatpush1.msra.mxu0 %v1735
    %1865 = vmatprep.subr.mxu0 0.0
    %1866 = vmatpush1.msra.mxu0 %v1734
    %1867 = vmatprep.subr.mxu0 0.0
    %1868 = vmatpush1.msra.mxu0 %v1733
    %1869 = vmatprep.subr.mxu0 0.0
    %1870 = vmatpush1.msra.mxu0 %v1732
    %1871 = vmatprep.subr.mxu0 0.0
    %1872 = vmatpush1.msra.mxu0 %v1731
    %1873 = vmatprep.subr.mxu0 0.0
    %1874 = vmatpush1.msra.mxu0 %v1730
    %1875 = vmatprep.subr.mxu0 0.0
    %1876 = vmatpush1.msra.mxu0 %v1729
    %1877 = vmatprep.subr.mxu0 0.0
    %1878 = vmatpush1.msra.mxu0 %v1728
    %1879 = vmatprep.subr.mxu0 0.0
    %1880 = vmatpush2.msra.mxu0 0.0
    %1881 = vmatprep.subr.mxu0 0.0
    %1882 = vmatpush2.msra.mxu0 0.0
    %1883 = vmatprep.subr.mxu0 0.0
    %1884 = vmatpush2.msra.mxu0 0.0
    %1885 = vmatprep.subr.mxu0 0.0
    %1886 = vmatpush2.msra.mxu0 0.0
    %1887 = vmatprep.subr.mxu0 0.0
    %1888 = vmatpush2.msra.mxu0 0.0
    %1889 = vmatprep.subr.mxu0 0.0
    %1890 = vmatpush2.msra.mxu0 0.0
    %1891 = vmatprep.subr.mxu0 0.0
    %1892 = vmatpush2.msra.mxu0 0.0
    %1893 = vmatprep.subr.mxu0 0.0
    %1894 = vmatpush2.msra.mxu0 0.0
    %1895 = vmatprep.subr.mxu0 0.0
    %1896 = vmatpush2.msra.mxu0 0.0
    %1897 = vmatprep.subr.mxu0 0.0
    %1898 = vmatpush2.msra.mxu0 0.0
    %1899 = vmatprep.subr.mxu0 0.0
    %1900 = vmatpush2.msra.mxu0 0.0
    %1901 = vmatprep.subr.mxu0 0.0
    %1902 = vmatpush2.msra.mxu0 0.0
    %1903 = vmatprep.subr.mxu0 0.0
    %1904 = vmatpush2.msra.mxu0 0.0
    %1905 = vmatprep.subr.mxu0 0.0
    %1906 = vmatpush2.msra.mxu0 0.0
    %1907 = vmatprep.subr.mxu0 0.0
    %1908 = vmatpush2.msra.mxu0 0.0
    %1909 = vmatprep.subr.mxu0 0.0
    %1910 = vmatpush2.msra.mxu0 0.0
    %1911 = vmatprep.mubr.f32.mxu0 0.0
    %1912 = vmatmul.mubr.f32.gmra.mxu0 %v1845
    %v1913 = vpop.f32.mrf.mxu0
    %v1914 = vadd.f32 0.0, %v1913
    %v1915 = vpop.f32.mrf.mxu0
    %1916 = vdwg.mxu0
    %v1917 = vmul.f32 %v1841, 0.03125
    %v1918 = vmul.f32 %v1914, 0.03125
    %v1919 = vmul.f32 %v1917, %v1917
    %v1920 = vsub.f32 %v1918, %v1919
    %v1921 = vadd.f32 %v1920, 1e-05
    %v1922 = vrsqrt.pop %v1921
    %v1923 = vld [vmem:[%s5] sm:$0x1]
    %v1924 = vmul.f32 %v1923, %v1922
    %v1925 = vld [vmem:[%s6] sm:$0x1]
    %v1926 = vmul.f32 %v1917, %v1924
    %v1927 = vsub.f32 %v1925, %v1926
    %v1928 = vld [vmem:[%s8] sm:$0xff]
    %v1929 = vld [vmem:[%s8 + $0x8] sm:$0xff]
    %v1931 = vsel %vm50, %v1924, 0
    %1933 = vmatprep.subr.mxu0 0.0
    %1934 = vmatpush1.msra.mxu0 0.0
    %1935 = vmatprep.subr.mxu0 0.0
    %1936 = vmatpush1.msra.mxu0 0.0
    %1937 = vmatprep.subr.mxu0 0.0
    %1938 = vmatpush1.msra.mxu0 0.0
    %1939 = vmatprep.subr.mxu0 0.0
    %1940 = vmatpush1.msra.mxu0 0.0
    %1941 = vmatprep.subr.mxu0 0.0
    %1942 = vmatpush1.msra.mxu0 0.0
    %1943 = vmatprep.subr.mxu0 0.0
    %1944 = vmatpush1.msra.mxu0 0.0
    %1945 = vmatprep.subr.mxu0 0.0
    %1946 = vmatpush1.msra.mxu0 0.0
    %1947 = vmatprep.subr.mxu0 0.0
    %1948 = vmatpush1.msra.mxu0 0.0
    %1949 = vmatprep.subr.mxu0 0.0
    %1950 = vmatpush1.msra.mxu0 0.0
    %1951 = vmatprep.subr.mxu0 0.0
    %1952 = vmatpush1.msra.mxu0 0.0
    %1953 = vmatprep.subr.mxu0 0.0
    %1954 = vmatpush1.msra.mxu0 0.0
    %1955 = vmatprep.subr.mxu0 0.0
    %1956 = vmatpush1.msra.mxu0 0.0
    %1957 = vmatprep.subr.mxu0 0.0
    %1958 = vmatpush1.msra.mxu0 0.0
    %1959 = vmatprep.subr.mxu0 0.0
    %1960 = vmatpush1.msra.mxu0 0.0
    %1961 = vmatprep.subr.mxu0 0.0
    %1962 = vmatpush1.msra.mxu0 %v1929
    %1963 = vmatprep.subr.mxu0 0.0
    %1964 = vmatpush1.msra.mxu0 %v1928
    %1965 = vmatprep.subr.mxu0 0.0
    %1966 = vmatpush2.msra.mxu0 0.0
    %1967 = vmatprep.subr.mxu0 0.0
    %1968 = vmatpush2.msra.mxu0 0.0
    %1969 = vmatprep.subr.mxu0 0.0
    %1970 = vmatpush2.msra.mxu0 0.0
    %1971 = vmatprep.subr.mxu0 0.0
    %1972 = vmatpush2.msra.mxu0 0.0
    %1973 = vmatprep.subr.mxu0 0.0
    %1974 = vmatpush2.msra.mxu0 0.0
    %1975 = vmatprep.subr.mxu0 0.0
    %1976 = vmatpush2.msra.mxu0 0.0
    %1977 = vmatprep.subr.mxu0 0.0
    %1978 = vmatpush2.msra.mxu0 0.0
    %1979 = vmatprep.subr.mxu0 0.0
    %1980 = vmatpush2.msra.mxu0 0.0
    %1981 = vmatprep.subr.mxu0 0.0
    %1982 = vmatpush2.msra.mxu0 0.0
    %1983 = vmatprep.subr.mxu0 0.0
    %1984 = vmatpush2.msra.mxu0 0.0
    %1985 = vmatprep.subr.mxu0 0.0
    %1986 = vmatpush2.msra.mxu0 0.0
    %1987 = vmatprep.subr.mxu0 0.0
    %1988 = vmatpush2.msra.mxu0 0.0
    %1989 = vmatprep.subr.mxu0 0.0
    %1990 = vmatpush2.msra.mxu0 0.0
    %1991 = vmatprep.subr.mxu0 0.0
    %1992 = vmatpush2.msra.mxu0 0.0
    %1993 = vmatprep.subr.mxu0 0.0
    %1994 = vmatpush2.msra.mxu0 0.0
    %1995 = vmatprep.subr.mxu0 0.0
    %1996 = vmatpush2.msra.mxu0 0.0
    %1997 = vmatprep.mubr.f32.mxu0 0.0
    %1998 = vmatmul.mubr.f32.gmra.mxu0 %v1931
    %v1999 = vpop.f32.mrf.mxu0
    %v2000 = vadd.f32 0.0, %v1999
    %v2001 = vpop.f32.mrf.mxu0
    %2002 = vdwg.mxu0
    %v2004 = vsel %vm50, %v1927, 0
    %2006 = vmatprep.subr.mxu0 0.0
    %2007 = vmatpush1.msra.mxu0 0.0
    %2008 = vmatprep.subr.mxu0 0.0
    %2009 = vmatpush1.msra.mxu0 0.0
    %2010 = vmatprep.subr.mxu0 0.0
    %2011 = vmatpush1.msra.mxu0 0.0
    %2012 = vmatprep.subr.mxu0 0.0
    %2013 = vmatpush1.msra.mxu0 0.0
    %2014 = vmatprep.subr.mxu0 0.0
    %2015 = vmatpush1.msra.mxu0 0.0
    %2016 = vmatprep.subr.mxu0 0.0
    %2017 = vmatpush1.msra.mxu0 0.0
    %2018 = vmatprep.subr.mxu0 0.0
    %2019 = vmatpush1.msra.mxu0 0.0
    %2020 = vmatprep.subr.mxu0 0.0
    %2021 = vmatpush1.msra.mxu0 0.0
    %2022 = vmatprep.subr.mxu0 0.0
    %2023 = vmatpush1.msra.mxu0 0.0
    %2024 = vmatprep.subr.mxu0 0.0
    %2025 = vmatpush1.msra.mxu0 0.0
    %2026 = vmatprep.subr.mxu0 0.0
    %2027 = vmatpush1.msra.mxu0 0.0
    %2028 = vmatprep.subr.mxu0 0.0
    %2029 = vmatpush1.msra.mxu0 0.0
    %2030 = vmatprep.subr.mxu0 0.0
    %2031 = vmatpush1.msra.mxu0 0.0
    %2032 = vmatprep.subr.mxu0 0.0
    %2033 = vmatpush1.msra.mxu0 0.0
    %2034 = vmatprep.subr.mxu0 0.0
    %2035 = vmatpush1.msra.mxu0 %v1929
    %2036 = vmatprep.subr.mxu0 0.0
    %2037 = vmatpush1.msra.mxu0 %v1928
    %2038 = vmatprep.subr.mxu0 0.0
    %2039 = vmatpush2.msra.mxu0 0.0
    %2040 = vmatprep.subr.mxu0 0.0
    %2041 = vmatpush2.msra.mxu0 0.0
    %2042 = vmatprep.subr.mxu0 0.0
    %2043 = vmatpush2.msra.mxu0 0.0
    %2044 = vmatprep.subr.mxu0 0.0
    %2045 = vmatpush2.msra.mxu0 0.0
    %2046 = vmatprep.subr.mxu0 0.0
    %2047 = vmatpush2.msra.mxu0 0.0
    %2048 = vmatprep.subr.mxu0 0.0
    %2049 = vmatpush2.msra.mxu0 0.0
    %2050 = vmatprep.subr.mxu0 0.0
    %2051 = vmatpush2.msra.mxu0 0.0
    %2052 = vmatprep.subr.mxu0 0.0
    %2053 = vmatpush2.msra.mxu0 0.0
    %2054 = vmatprep.subr.mxu0 0.0
    %2055 = vmatpush2.msra.mxu0 0.0
    %2056 = vmatprep.subr.mxu0 0.0
    %2057 = vmatpush2.msra.mxu0 0.0
    %2058 = vmatprep.subr.mxu0 0.0
    %2059 = vmatpush2.msra.mxu0 0.0
    %2060 = vmatprep.subr.mxu0 0.0
    %2061 = vmatpush2.msra.mxu0 0.0
    %2062 = vmatprep.subr.mxu0 0.0
    %2063 = vmatpush2.msra.mxu0 0.0
    %2064 = vmatprep.subr.mxu0 0.0
    %2065 = vmatpush2.msra.mxu0 0.0
    %2066 = vmatprep.subr.mxu0 0.0
    %2067 = vmatpush2.msra.mxu0 0.0
    %2068 = vmatprep.subr.mxu0 0.0
    %2069 = vmatpush2.msra.mxu0 0.0
    %2070 = vmatprep.mubr.f32.mxu0 0.0
    %2071 = vmatmul.mubr.f32.gmra.mxu0 %v2004
    %v2072 = vpop.f32.mrf.mxu0
    %v2073 = vadd.f32 0.0, %v2072
    %v2074 = vpop.f32.mrf.mxu0
    %2075 = vdwg.mxu0
    %v2076 = vlaneseq
    %v2077 = vshrl.u32 %v2076, 7
    %v2078 = vsub.s32 0, %v2077
    %v2079 = vrot.slane %v2000, %v2078
    %v2080 = vmul.f32 %v1385, %v2079
    %v2081 = vlaneseq
    %v2082 = vshrl.u32 %v2081, 7
    %v2083 = vsub.s32 0, %v2082
    %v2084 = vrot.slane %v2073, %v2083
    %v2085 = vadd.f32 %v2080, %v2084
    %vm2086 = vcmp.gt.f32.partialorder %v2085, 0.0
    %v2087 = vmul.f32 %v2085, 0.2
    %v2088 = vsel %vm2086, %v2085, %v2087
    %v2089 = vmul.f32 %v1727, %v2079
    %v2090 = vadd.f32 %v2089, %v2084
    %vm2091 = vcmp.gt.f32.partialorder %v2090, 0.0
    %v2092 = vmul.f32 %v2090, 0.2
    %v2093 = vsel %vm2091, %v2090, %v2092
    %v2094 = vld [vmem:[%s9] sm:$0xf]
    %2095 = vst.msk [vmem:[%s10] sm:$0xf] %vm1736, %v2088
    %v2096 = vmul.f32 %v2088, %v2094
    %v2097 = vsel %vm1736, %v2096, 0.0
    %2098 = vadd.xlane.f32.xlu0 %v2097
    %v2099 = vpop.xlane.xlu0 %2098
    %v2100 = vsel %vm898, %v2099, 0.0
    %v2101 = vrot.slane %v2100, 4
    %v2102 = vadd.f32 %v2100, %v2101
    %v2103 = vrot.slane %v2102, 2
    %v2104 = vadd.f32 %v2102, %v2103
    %v2105 = vrot.slane %v2104, 1
    %v2106 = vadd.f32 %v2104, %v2105
    %vm2107 = vcmask 0
    %2108 = vst.msk [vmem:[%s11] sm:$0x1] %vm2107, %v2106
    %v2109 = vxor.u32 %v2106, 2147483648
    %v2110 = vmul.f32 %v2109, 1.442695
    %v2111 = vpow.pop %v2110
    %v2112 = vadd.f32 %v2111, 1.0
    %v2113 = vrcp.pop %v2112
    %v2114 = vmul.f32 1.0, %v2113
    %2115 = vst.msk [vmem:[%s12] sm:$0x1] %vm2107, %v2114
    %s2116 = scalar_lea.vmem %s10, 4
    %2117 = vst.msk [vmem:[%s2116] sm:$0xf] %vm1736, %v2093
    %v2118 = vmul.f32 %v2093, %v2094
    %v2119 = vsel %vm1736, %v2118, 0.0
    %2120 = vadd.xlane.f32.xlu0 %v2119
    %v2121 = vpop.xlane.xlu0 %2120
    %v2122 = vsel %vm898, %v2121, 0.0
    %v2123 = vrot.slane %v2122, 4
    %v2124 = vadd.f32 %v2122, %v2123
    %v2125 = vrot.slane %v2124, 2
    %v2126 = vadd.f32 %v2124, %v2125
    %v2127 = vrot.slane %v2126, 1
    %v2128 = vadd.f32 %v2126, %v2127
    %2129 = vst.msk [vmem:[%s11 + $0x1] sm:$0x1] %vm2107, %v2128
    %v2130 = vxor.u32 %v2128, 2147483648
    %v2131 = vmul.f32 %v2130, 1.442695
    %v2132 = vpow.pop %v2131
    %v2133 = vadd.f32 %v2132, 1.0
    %v2134 = vrcp.pop %v2133
    %v2135 = vmul.f32 1.0, %v2134
    %2136 = vst.msk [vmem:[%s12 + $0x1] sm:$0x1] %vm2107, %v2135
    %v2137 = vadd.f32 %v2106, %v2128
    %v2138 = vmul.f32 %v2137, 0.5
    %2139 = vst.msk [vmem:[#allocation2] sm:$0x1] %vm2107, %v2138
    // Predicated region
    $region42: #{_lambda_.1} parent=1 // pred_check
      _
    $region43: #{_lambda_.1} parent=1 // pred_check_branch
      %2141 = sbr.rel (0) target = $region45
    $region44: #{_lambda_.1} parent=1 // pred_region
      _
    $region45: #{_lambda_.1} parent=1 // pred_fallthru
      _
    // Predicated region
    $region46: #{_lambda_.1} parent=1 // pred_check
      _
    $region47: #{_lambda_.1} parent=1 // pred_check_branch
      %2143 = sbr.rel (0) target = $region49
    $region48: #{_lambda_.1} parent=1 // pred_region
      _
    $region49: #{_lambda_.1} parent=1 // pred_fallthru
      _
    // Predicated region
    $region50: #{_lambda_.1} parent=1 // pred_check
      _
    $region51: #{_lambda_.1} parent=1 // pred_check_branch
      %2145 = sbr.rel (0) target = $region53
    $region52: #{_lambda_.1} parent=1 // pred_region
      _
    $region53: #{_lambda_.1} parent=1 // pred_fallthru
      _
    // Predicated region
    $region54: #{_lambda_.1} parent=1 // pred_check
      _
    $region55: #{_lambda_.1} parent=1 // pred_check_branch
      %2147 = sbr.rel (0) target = $region57
    $region56: #{_lambda_.1} parent=1 // pred_region
      %s2149 = ssub.s32 16, 16
      %2150 = vsyncadd [#allocation3], %s2149
      %s2152 = sshll.u32 [#allocation2], 4
      %s2153 = int_to_ptr.vmem [resolvable:$true] %s2152
      %2155 = dma.vmem_to_hbm [thread:$0]  %s2153, 16, %s13, [#allocation3]
    $region57: #{_lambda_.1} parent=1 // pred_fallthru
      _
    // Predicated region
    $region58: #{_lambda_.1} parent=1 // pred_check
      _
    $region59: #{_lambda_.1} parent=1 // pred_check_branch
      %2157 = sbr.rel (0) target = $region61
    $region60: #{_lambda_.1} parent=1 // pred_region
      _
    $region61: #{_lambda_.1} parent=1 // pred_fallthru
      _
    // Predicated region
    $region62: #{_lambda_.1} parent=1 // pred_check
      _
    $region63: #{_lambda_.1} parent=1 // pred_check_branch
      %2159 = sbr.rel (0) target = $region65
    $region64: #{_lambda_.1} parent=1 // pred_region
      _
    $region65: #{_lambda_.1} parent=1 // pred_fallthru
      _
    // Predicated region
    $region66: #{_lambda_.1} parent=1 // pred_check
      _
    $region67: #{_lambda_.1} parent=1 // pred_check_branch
      %2161 = sbr.rel (0) target = $region69
    $region68: #{_lambda_.1} parent=1 // pred_region
      _
    $region69: #{_lambda_.1} parent=1 // pred_fallthru
      _
    // Predicated region
    $region70: #{_lambda_.1} parent=1 // pred_check
      _
    $region71: #{_lambda_.1} parent=1 // pred_check_branch
      %2163 = sbr.rel (0) target = $region73
    $region72: #{_lambda_.1} parent=1 // pred_region
      %2164 = dma.done [#allocation3], 16
    $region73: #{_lambda_.1} parent=1 // pred_fallthru
      _
    %2165 = vsyncpa [#allocation3], 1

</llo_original>
